<compile_context>
chip_gen: v7x
topology: tpu7x:2x2x1
jax: 0.10.0
libtpu: 0.0.40
codegen_flags: <defaults>
</compile_context>

<pallas_src>
import functools

import jax
import jax.numpy as jnp
import numpy as np
from jax.experimental import pallas as pl
from jax.experimental.pallas import tpu as pltpu


def _pointwise(w, t, use_mxu, mm_dtype):
    """1x1 conv: (Cout,Cin) @ (Cin,S).

    VPU f32 weighted sum for small C (MXU would be <5% utilized and would add
    bf16 pack/unpack on v5e); MXU bf16-in / f32-acc matmul for large C."""
    if use_mxu:
        return jnp.dot(w.astype(mm_dtype), t.astype(mm_dtype),
                       preferred_element_type=jnp.float32)
    C = w.shape[0]
    acc = w[:, 0:1] * t[0:1, :]
    for c in range(1, C):                       # static unroll (small C only)
        acc = acc + w[:, c:c + 1] * t[c:c + 1, :]
    return acc


def _adsc_kernel(x_ref, halo_ref, k1_ref, b1_ref, w1_ref, k2_ref, b2_ref,
                 w2_ref, o_ref, tmp_ref, *, S, W, dW, dil, use_mxu, mm_dtype):
    f32 = jnp.float32
    x = x_ref[0].astype(f32)                    # (C, S), S = TILE_H * W

    # W-direction boundary masks, built in-kernel (no DMA'd mask constant).
    lane = jax.lax.broadcasted_iota(jnp.int32, (1, S), 1)
    if W & (W - 1) == 0:
        wpos = lane & (W - 1)                   # power-of-two fast path
    else:
        wpos = lane % W
    m_lf = wpos >= dil                          # valid lanes for the w-dil tap
    m_rt = wpos < (W - dil)                     # valid lanes for the w+dil tap

    halos = halo_ref[0, 0].astype(f32)          # (C, 2*dW): [top rows | bottom rows]

    # ---- depthwise (3,1) along H (BN1 scale folded into k1) -----------------
    # Shifted taps via lane roll; the dil halo rows are slice-stored over the
    # wrapped lanes (no scatter matmul, no mask multiply).
    k1 = k1_ref[...]                            # (3, C, 1)
    tmp_ref[...] = pltpu.roll(x, dW % S, axis=1)           # x[h-dil] (interior)
    tmp_ref[:, pl.ds(0, dW)] = halos[:, :dW]                # rows above the tile
    y = k1[0] * tmp_ref[...] + k1[1] * x
    tmp_ref[...] = pltpu.roll(x, (S - dW) % S, axis=1)      # x[h+dil] (interior)
    tmp_ref[:, pl.ds(S - dW, dW)] = halos[:, dW:]           # rows below the tile
    y = y + k1[2] * tmp_ref[...]
    y = jnp.maximum(y + b1_ref[...], 0.0)                   # BN1 bias + ReLU

    # ---- 1x1 conv #1 ---------------------------------------------------------
    u = _pointwise(w1_ref[...], y, use_mxu, mm_dtype)

    # ---- depthwise (1,3) along W (BN2 scale folded into k2) -----------------
    k2 = k2_ref[...]
    u_l = jnp.where(m_lf, pltpu.roll(u, dil % S, axis=1), 0.0)        # u[w-dil]
    u_r = jnp.where(m_rt, pltpu.roll(u, (S - dil) % S, axis=1), 0.0)  # u[w+dil]
    v = k2[0] * u_l + k2[1] * u + k2[2] * u_r
    v = jnp.maximum(v + b2_ref[...], 0.0)                   # BN2 bias + ReLU

    # ---- 1x1 conv #2 ---------------------------------------------------------
    z = _pointwise(w2_ref[...], v, use_mxu, mm_dtype)

    # ---- residual skip: re-read x_ref (don't keep x live across the convs) --
    o_ref[0] = (x_ref[0].astype(f32) + z).astype(o_ref.dtype)


def _vmem_capacity_bytes():
    """Physical VMEM per TensorCore (generation-aware), with a safe fallback."""
    try:
        cap = int(pltpu.get_tpu_info().vmem_capacity_bytes)
        if cap > 0:
            return cap
    except Exception:
        pass
    return 64 << 20        # conservative: v7x per-TC VMEM


def _estimate_vmem_bytes(C, TH, W, dil, io_bytes):
    """VMEM live during one grid step: 2x double-buffered x/out tiles, the
    double-buffered halo block, one scratch slab, ~7 live f32 working slabs
    in the body, and the (possibly double-buffered) constants."""
    S = TH * W
    dW = dil * W
    tile_io = C * S * io_bytes
    halo_io = C * 2 * dW * io_bytes
    consts = (2 * C * C + 8 * C) * 4
    work_f32 = C * S * 4
    return (2 * tile_io) * 2 + 2 * halo_io + work_f32 * 8 + 2 * consts


def _pick_tile_h(H, W, C, dil, budget_bytes, io_bytes, prefer_256):
    """Largest TILE_H that divides H, keeps S=TILE_H*W lane-dense (multiple of
    128 or the full image), TILE_H >= dil, and fits the per-step VMEM budget."""
    cands = [th for th in range(1, H + 1)
             if H % th == 0 and th >= dil
             and ((th * W) % 128 == 0 or th == H)]
    fitting = [th for th in cands
               if _estimate_vmem_bytes(C, th, W, dil, io_bytes) <= budget_bytes]
    pool = fitting if fitting else [min(cands)]
    if prefer_256:                              # v6e/v7x MXU is 256 wide
        p256 = [th for th in pool if (th * W) % 256 == 0]
        if p256:
            return max(p256)
    return max(pool)


def adsc_forward(x_nchw, params, dilation=1, tile_h=None,
                 io_dtype=jnp.float32, matmul_dtype=jnp.bfloat16,
                 use_mxu=None):
    """ADSCModule(channels=C, stride=1) forward.  x_nchw: (N, C, H, W)."""
    N, C, H, W = x_nchw.shape
    dil = int(dilation)
    assert 1 <= dil <= H
    if use_mxu is None:
        use_mxu = C >= 128                      # tiny contractions stay on the VPU

    io_bytes = jnp.dtype(io_dtype).itemsize
    vmem_cap = _vmem_capacity_bytes()
    vmem_limit = (vmem_cap * 3) // 4            # ~96 MiB on v5e/v6e, ~48 MiB on v7x
    budget = (vmem_limit * 7) // 10             # >=30% headroom for the tile picker

    if tile_h is None:
        TH = _pick_tile_h(H, W, C, dil, budget, io_bytes, prefer_256=use_mxu)
    else:
        TH = int(tile_h)
    assert H % TH == 0 and TH >= dil
    assert (TH * W) % 128 == 0 or TH == H, "need lane-dense (mult-of-128) tiles"
    nT = H // TH
    S = TH * W
    dW = dil * W

    x = x_nchw.astype(io_dtype)
    x_flat = x.reshape(N, C, H * W)             # channels-first, spatial flat

    # ---- halo rows: dil rows above/below each H tile (zero at image border) --
    # Only 2*dil rows per tile are touched; no full-image padded copy of x.
    x_r = x.reshape(N, C, nT, TH, W)
    zrow = jnp.zeros((N, C, 1, dil, W), x.dtype)
    top = jnp.concatenate([zrow, x_r[:, :, :nT - 1, TH - dil:, :]], axis=2)
    bot = jnp.concatenate([x_r[:, :, 1:, :dil, :], zrow], axis=2)
    halos = jnp.concatenate([top, bot], axis=3)                   # (N,C,nT,2*dil,W)
    halos = jnp.transpose(halos, (0, 2, 1, 3, 4)).reshape(N, nT, C, 2 * dW)

    # ---- host-side parameter folding (BN scale folded into the DW kernels) --
    k1f = (params["dwk1"] * params["s1"][None, :]).reshape(3, C, 1)
    k2f = (params["dwk2"] * params["s2"][None, :]).reshape(3, C, 1)
    b1 = params["b1"].reshape(C, 1)
    b2 = params["b2"].reshape(C, 1)
    w1, w2 = params["w1"], params["w2"]         # (Cout, Cin)

    kern = functools.partial(_adsc_kernel, S=S, W=W, dW=dW, dil=dil,
                             use_mxu=use_mxu, mm_dtype=matmul_dtype)
    args = (x_flat, halos, k1f, b1, w1, k2f, b2, w2)

    def build(single_buffer_consts):
        def const_spec(shape):
            r = len(shape)
            if single_buffer_consts:
                # Constants never change block index -> one pipeline buffer.
                return pl.BlockSpec(shape, lambda n, t: (0,) * r,
                                    pipeline_mode=pl.Buffered(1))
            return pl.BlockSpec(shape, lambda n, t: (0,) * r)

        return pl.pallas_call(
            kern,
            out_shape=jax.ShapeDtypeStruct((N, C, H * W), io_dtype),
            grid=(N, nT),
            in_specs=[
                pl.BlockSpec((1, C, S), lambda n, t: (n, 0, t)),            # x tile
                pl.BlockSpec((1, 1, C, 2 * dW), lambda n, t: (n, t, 0, 0)),  # halos
                const_spec((3, C, 1)),   # DW (3,1) kernel, BN1 scale folded
                const_spec((C, 1)),      # BN1 bias
                const_spec((C, C)),      # 1x1 conv #1 (Cout, Cin)
                const_spec((3, C, 1)),   # DW (1,3) kernel, BN2 scale folded
                const_spec((C, 1)),      # BN2 bias
                const_spec((C, C)),      # 1x1 conv #2
            ],
            out_specs=pl.BlockSpec((1, C, S), lambda n, t: (n, 0, t)),      # lane-dense
            scratch_shapes=[pltpu.VMEM((C, S), jnp.float32)],
            # Both axes parallel: megacore / v7x 2-TC sharding (N*nT >= 2 here).
            compiler_params=pltpu.CompilerParams(
                dimension_semantics=("parallel", "parallel"),
                vmem_limit_bytes=int(vmem_limit)),
        )

    try:
        out = build(single_buffer_consts=True)(*args)
    except Exception:
        # Runtime / version without BlockSpec pipeline_mode support: fall back
        # to default double-buffered constants (a few KB, harmless).
        out = build(single_buffer_consts=False)(*args)

    return out.reshape(N, C, H, W)


def init_params(channels, key):
    """Deterministic synthetic parameters; BN uses folded inference stats."""
    C = channels
    ks = jax.random.split(key, 12)
    eps = 1e-5

    def fold_bn(kg, kb, km, kv):
        gamma = 0.8 + 0.4 * jax.random.uniform(kg, (C,), jnp.float32)
        beta = 0.1 * jax.random.normal(kb, (C,), jnp.float32)
        mean = 0.1 * jax.random.normal(km, (C,), jnp.float32)
        var = 0.5 + jax.random.uniform(kv, (C,), jnp.float32)
        scale = gamma / jnp.sqrt(var + eps)
        return scale, beta - mean * scale

    s1, b1 = fold_bn(ks[2], ks[3], ks[4], ks[5])
    s2, b2 = fold_bn(ks[6], ks[7], ks[8], ks[9])
    return {
        "dwk1": 0.3 * jax.random.normal(ks[0], (3, C), jnp.float32),
        "dwk2": 0.3 * jax.random.normal(ks[1], (3, C), jnp.float32),
        "s1": s1, "b1": b1, "s2": s2, "b2": b2,
        # conv1x1 weights stored as (Cout, Cin) = torch weight[:, :, 0, 0]
        "w1": jax.random.normal(ks[10], (C, C), jnp.float32) / np.sqrt(C),
        "w2": jax.random.normal(ks[11], (C, C), jnp.float32) / np.sqrt(C),
    }


def _reference(x, p, dil):
    """Pure-JAX reference (lax convs, f32) for correctness checking."""
    N, C, H, W = x.shape

    def dw(t, w_oihw, pad):
        return jax.lax.conv_general_dilated(
            t, w_oihw, window_strides=(1, 1), padding=pad,
            rhs_dilation=(dil, dil), feature_group_count=C,
            dimension_numbers=("NCHW", "OIHW", "NCHW"), precision="highest")

    def bn_act(t, s, b):
        return jax.nn.relu(t * s.reshape(1, C, 1, 1) + b.reshape(1, C, 1, 1))

    def pw(t, w):  # w: (Cout, Cin)
        return jnp.einsum("nchw,oc->nohw", t, w, precision="highest")

    w_dw1 = jnp.transpose(p["dwk1"]).reshape(C, 1, 3, 1)
    w_dw2 = jnp.transpose(p["dwk2"]).reshape(C, 1, 1, 3)

    y = bn_act(dw(x, w_dw1, [(dil, dil), (0, 0)]), p["s1"], p["b1"])
    y = pw(y, p["w1"])
    y = bn_act(dw(y, w_dw2, [(0, 0), (dil, dil)]), p["s2"], p["b2"])
    y = pw(y, p["w2"])
    return x + y


if __name__ == "__main__":
    N, C, H, W = 2, 4, 16, 16

    key = jax.random.PRNGKey(0)
    kx, kp = jax.random.split(key)
    x = jax.random.normal(kx, (N, C, H, W), jnp.float32)
    params = init_params(C, kp)

    # tile_h=8 -> 2 H tiles per image: exercises the inter-tile halo path.
    # Small C -> VPU f32 pointwise path -> tight tolerance.
    for dilation in (1, 2):
        out = jax.block_until_ready(
            adsc_forward(x, params, dilation=dilation, tile_h=8))
        ref = jax.block_until_ready(_reference(x, params, dilation))
        np.testing.assert_allclose(np.asarray(out), np.asarray(ref),
                                   rtol=1e-3, atol=1e-3)
        assert out.shape == (N, C, H, W)

    # Default (generation-aware) tile picker path as well.
    out = jax.block_until_ready(adsc_forward(x, params, dilation=1))
    np.testing.assert_allclose(np.asarray(out),
                               np.asarray(_reference(x, params, 1)),
                               rtol=1e-3, atol=1e-3)

    print("KERNEL_OK")
</pallas_src>

<mosaic_0001>
module attributes {stable_mosaic.version = 11 : i64} {
  func.func @_adsc_kernel(%arg0: i32, %arg1: i32, %arg2: memref<1x4x128xf32, #tpu.memory_space<vmem>>, %arg3: memref<1x1x4x32xf32, #tpu.memory_space<vmem>>, %arg4: memref<3x4x1xf32, #tpu.memory_space<vmem>>, %arg5: memref<4x1xf32, #tpu.memory_space<vmem>>, %arg6: memref<4x4xf32, #tpu.memory_space<vmem>>, %arg7: memref<3x4x1xf32, #tpu.memory_space<vmem>>, %arg8: memref<4x1xf32, #tpu.memory_space<vmem>>, %arg9: memref<4x4xf32, #tpu.memory_space<vmem>>, %arg10: memref<1x4x128xf32, #tpu.memory_space<vmem>>, %arg11: memref<4x128xf32, #tpu.memory_space<vmem>>) attributes {dimension_semantics = [#tpu.dimension_semantics<parallel>, #tpu.dimension_semantics<parallel>], iteration_bounds = array<i64: 2, 2>, scalar_prefetch = 0 : i64, scratch_operands = 1 : i64, tpu.core_type = #tpu.core_type<tc>, window_params = [{transform_indices = @transform_0, window_bounds = array<i64: 1, 4, 128>}, {transform_indices = @transform_1, window_bounds = array<i64: 1, 1, 4, 32>}, {pipeline_mode = #tpu.pipeline_mode<synchronous>, transform_indices = @transform_2, window_bounds = array<i64: 3, 4, 1>}, {pipeline_mode = #tpu.pipeline_mode<synchronous>, transform_indices = @transform_3, window_bounds = array<i64: 4, 1>}, {pipeline_mode = #tpu.pipeline_mode<synchronous>, transform_indices = @transform_4, window_bounds = array<i64: 4, 4>}, {pipeline_mode = #tpu.pipeline_mode<synchronous>, transform_indices = @transform_5, window_bounds = array<i64: 3, 4, 1>}, {pipeline_mode = #tpu.pipeline_mode<synchronous>, transform_indices = @transform_6, window_bounds = array<i64: 4, 1>}, {pipeline_mode = #tpu.pipeline_mode<synchronous>, transform_indices = @transform_7, window_bounds = array<i64: 4, 4>}, {transform_indices = @transform_8, window_bounds = array<i64: 1, 4, 128>}]} {
    %c0 = arith.constant 0 : index
    %c0_0 = arith.constant 0 : index
    %c0_1 = arith.constant 0 : index
    %0 = vector.load %arg2[%c0, %c0_0, %c0_1] : memref<1x4x128xf32, #tpu.memory_space<vmem>>, vector<1x4x128xf32>
    %1 = vector.shape_cast %0 : vector<1x4x128xf32> to vector<4x128xf32>
    %2 = tpu.iota {dimensions = array<i32: 1>} : vector<1x128xi32>
    %c15_i32 = arith.constant 15 : i32
    %3 = vector.broadcast %c15_i32 : i32 to vector<1x128xi32>
    %4 = arith.andi %2, %3 : vector<1x128xi32>
    %c1_i32 = arith.constant 1 : i32
    %5 = vector.broadcast %c1_i32 : i32 to vector<1x128xi32>
    %6 = arith.cmpi sge, %4, %5 : vector<1x128xi32>
    %c15_i32_2 = arith.constant 15 : i32
    %7 = vector.broadcast %c15_i32_2 : i32 to vector<1x128xi32>
    %8 = arith.cmpi slt, %4, %7 : vector<1x128xi32>
    %c0_3 = arith.constant 0 : index
    %c0_4 = arith.constant 0 : index
    %c0_5 = arith.constant 0 : index
    %c0_6 = arith.constant 0 : index
    %9 = vector.load %arg3[%c0_3, %c0_4, %c0_5, %c0_6] : memref<1x1x4x32xf32, #tpu.memory_space<vmem>>, vector<1x1x4x32xf32>
    %10 = vector.shape_cast %9 : vector<1x1x4x32xf32> to vector<4x32xf32>
    %c0_7 = arith.constant 0 : index
    %c0_8 = arith.constant 0 : index
    %c0_9 = arith.constant 0 : index
    %11 = vector.load %arg4[%c0_7, %c0_8, %c0_9] : memref<3x4x1xf32, #tpu.memory_space<vmem>>, vector<3x4x1xf32>
    %c16_i32 = arith.constant 16 : i32
    %12 = tpu.dynamic_rotate %1 by %c16_i32 dim 1 : vector<4x128xf32>, i32 -> vector<4x128xf32>
    %c0_10 = arith.constant 0 : index
    %c0_11 = arith.constant 0 : index
    %13 = vector.load %arg11[%c0_10, %c0_11] : memref<4x128xf32, #tpu.memory_space<vmem>>, vector<4x128xf32>
    tpu.vector_store %arg11[%c0_10, %c0_11], %12 {strides = array<i32>} : memref<4x128xf32, #tpu.memory_space<vmem>>, vector<4x128xf32>,
    %14 = vector.extract_strided_slice %10 {offsets = [0, 0], sizes = [4, 16], strides = [1, 1]} : vector<4x32xf32> to vector<4x16xf32>
    %c0_12 = arith.constant 0 : index
    %c0_13 = arith.constant 0 : index
    %15 = vector.load %arg11[%c0_12, %c0_13] : memref<4x128xf32, #tpu.memory_space<vmem>>, vector<4x16xf32>
    tpu.vector_store %arg11[%c0_12, %c0_13], %14 {strides = array<i32>} : memref<4x128xf32, #tpu.memory_space<vmem>>, vector<4x16xf32>,
    %16 = vector.extract_strided_slice %11 {offsets = [0, 0, 0], sizes = [1, 4, 1], strides = [1, 1, 1]} : vector<3x4x1xf32> to vector<1x4x1xf32>
    %17 = vector.shape_cast %16 : vector<1x4x1xf32> to vector<4x1xf32>
    %c0_14 = arith.constant 0 : index
    %c0_15 = arith.constant 0 : index
    %18 = vector.load %arg11[%c0_14, %c0_15] : memref<4x128xf32, #tpu.memory_space<vmem>>, vector<4x128xf32>
    %19 = vector.broadcast %17 : vector<4x1xf32> to vector<4x128xf32>
    %20 = arith.mulf %19, %18 : vector<4x128xf32>
    %21 = vector.extract_strided_slice %11 {offsets = [1, 0, 0], sizes = [1, 4, 1], strides = [1, 1, 1]} : vector<3x4x1xf32> to vector<1x4x1xf32>
    %22 = vector.shape_cast %21 : vector<1x4x1xf32> to vector<4x1xf32>
    %23 = vector.broadcast %22 : vector<4x1xf32> to vector<4x128xf32>
    %24 = arith.mulf %23, %1 : vector<4x128xf32>
    %25 = arith.addf %20, %24 : vector<4x128xf32>
    %c112_i32 = arith.constant 112 : i32
    %26 = tpu.dynamic_rotate %1 by %c112_i32 dim 1 : vector<4x128xf32>, i32 -> vector<4x128xf32>
    %c0_16 = arith.constant 0 : index
    %c0_17 = arith.constant 0 : index
    %27 = vector.load %arg11[%c0_16, %c0_17] : memref<4x128xf32, #tpu.memory_space<vmem>>, vector<4x128xf32>
    tpu.vector_store %arg11[%c0_16, %c0_17], %26 {strides = array<i32>} : memref<4x128xf32, #tpu.memory_space<vmem>>, vector<4x128xf32>,
    %28 = vector.extract_strided_slice %10 {offsets = [0, 16], sizes = [4, 16], strides = [1, 1]} : vector<4x32xf32> to vector<4x16xf32>
    %c0_18 = arith.constant 0 : index
    %c112 = arith.constant 112 : index
    %29 = vector.load %arg11[%c0_18, %c112] : memref<4x128xf32, #tpu.memory_space<vmem>>, vector<4x16xf32>
    tpu.vector_store %arg11[%c0_18, %c112], %28 {strides = array<i32>} : memref<4x128xf32, #tpu.memory_space<vmem>>, vector<4x16xf32>,
    %30 = vector.extract_strided_slice %11 {offsets = [2, 0, 0], sizes = [1, 4, 1], strides = [1, 1, 1]} : vector<3x4x1xf32> to vector<1x4x1xf32>
    %31 = vector.shape_cast %30 : vector<1x4x1xf32> to vector<4x1xf32>
    %c0_19 = arith.constant 0 : index
    %c0_20 = arith.constant 0 : index
    %32 = vector.load %arg11[%c0_19, %c0_20] : memref<4x128xf32, #tpu.memory_space<vmem>>, vector<4x128xf32>
    %33 = vector.broadcast %31 : vector<4x1xf32> to vector<4x128xf32>
    %34 = arith.mulf %33, %32 : vector<4x128xf32>
    %35 = arith.addf %25, %34 : vector<4x128xf32>
    %c0_21 = arith.constant 0 : index
    %c0_22 = arith.constant 0 : index
    %36 = vector.load %arg5[%c0_21, %c0_22] : memref<4x1xf32, #tpu.memory_space<vmem>>, vector<4x1xf32>
    %37 = vector.broadcast %36 : vector<4x1xf32> to vector<4x128xf32>
    %38 = arith.addf %35, %37 : vector<4x128xf32>
    %cst = arith.constant 0.000000e+00 : f32
    %39 = vector.broadcast %cst : f32 to vector<4x128xf32>
    %40 = arith.maximumf %38, %39 : vector<4x128xf32>
    %c0_23 = arith.constant 0 : index
    %c0_24 = arith.constant 0 : index
    %41 = vector.load %arg6[%c0_23, %c0_24] : memref<4x4xf32, #tpu.memory_space<vmem>>, vector<4x4xf32>
    %42 = vector.extract_strided_slice %41 {offsets = [0, 0], sizes = [4, 1], strides = [1, 1]} : vector<4x4xf32> to vector<4x1xf32>
    %43 = vector.extract_strided_slice %40 {offsets = [0, 0], sizes = [1, 128], strides = [1, 1]} : vector<4x128xf32> to vector<1x128xf32>
    %44 = vector.broadcast %42 : vector<4x1xf32> to vector<4x128xf32>
    %45 = vector.broadcast %43 : vector<1x128xf32> to vector<4x128xf32>
    %46 = arith.mulf %44, %45 : vector<4x128xf32>
    %47 = vector.extract_strided_slice %41 {offsets = [0, 1], sizes = [4, 1], strides = [1, 1]} : vector<4x4xf32> to vector<4x1xf32>
    %48 = vector.extract_strided_slice %40 {offsets = [1, 0], sizes = [1, 128], strides = [1, 1]} : vector<4x128xf32> to vector<1x128xf32>
    %49 = vector.broadcast %47 : vector<4x1xf32> to vector<4x128xf32>
    %50 = vector.broadcast %48 : vector<1x128xf32> to vector<4x128xf32>
    %51 = arith.mulf %49, %50 : vector<4x128xf32>
    %52 = arith.addf %46, %51 : vector<4x128xf32>
    %53 = vector.extract_strided_slice %41 {offsets = [0, 2], sizes = [4, 1], strides = [1, 1]} : vector<4x4xf32> to vector<4x1xf32>
    %54 = vector.extract_strided_slice %40 {offsets = [2, 0], sizes = [1, 128], strides = [1, 1]} : vector<4x128xf32> to vector<1x128xf32>
    %55 = vector.broadcast %53 : vector<4x1xf32> to vector<4x128xf32>
    %56 = vector.broadcast %54 : vector<1x128xf32> to vector<4x128xf32>
    %57 = arith.mulf %55, %56 : vector<4x128xf32>
    %58 = arith.addf %52, %57 : vector<4x128xf32>
    %59 = vector.extract_strided_slice %41 {offsets = [0, 3], sizes = [4, 1], strides = [1, 1]} : vector<4x4xf32> to vector<4x1xf32>
    %60 = vector.extract_strided_slice %40 {offsets = [3, 0], sizes = [1, 128], strides = [1, 1]} : vector<4x128xf32> to vector<1x128xf32>
    %61 = vector.broadcast %59 : vector<4x1xf32> to vector<4x128xf32>
    %62 = vector.broadcast %60 : vector<1x128xf32> to vector<4x128xf32>
    %63 = arith.mulf %61, %62 : vector<4x128xf32>
    %64 = arith.addf %58, %63 : vector<4x128xf32>
    %c0_25 = arith.constant 0 : index
    %c0_26 = arith.constant 0 : index
    %c0_27 = arith.constant 0 : index
    %65 = vector.load %arg7[%c0_25, %c0_26, %c0_27] : memref<3x4x1xf32, #tpu.memory_space<vmem>>, vector<3x4x1xf32>
    %c1_i32_28 = arith.constant 1 : i32
    %66 = tpu.dynamic_rotate %64 by %c1_i32_28 dim 1 : vector<4x128xf32>, i32 -> vector<4x128xf32>
    %cst_29 = arith.constant 0.000000e+00 : f32
    %67 = vector.shape_cast %6 : vector<1x128xi1> to vector<1x128xi1>
    %68 = vector.broadcast %67 : vector<1x128xi1> to vector<4x128xi1>
    %69 = vector.broadcast %cst_29 : f32 to vector<4x128xf32>
    %70 = arith.select %68, %66, %69 : vector<4x128xi1>, vector<4x128xf32>
    %c127_i32 = arith.constant 127 : i32
    %71 = tpu.dynamic_rotate %64 by %c127_i32 dim 1 : vector<4x128xf32>, i32 -> vector<4x128xf32>
    %cst_30 = arith.constant 0.000000e+00 : f32
    %72 = vector.shape_cast %8 : vector<1x128xi1> to vector<1x128xi1>
    %73 = vector.broadcast %72 : vector<1x128xi1> to vector<4x128xi1>
    %74 = vector.broadcast %cst_30 : f32 to vector<4x128xf32>
    %75 = arith.select %73, %71, %74 : vector<4x128xi1>, vector<4x128xf32>
    %76 = vector.extract_strided_slice %65 {offsets = [0, 0, 0], sizes = [1, 4, 1], strides = [1, 1, 1]} : vector<3x4x1xf32> to vector<1x4x1xf32>
    %77 = vector.shape_cast %76 : vector<1x4x1xf32> to vector<4x1xf32>
    %78 = vector.broadcast %77 : vector<4x1xf32> to vector<4x128xf32>
    %79 = arith.mulf %78, %70 : vector<4x128xf32>
    %80 = vector.extract_strided_slice %65 {offsets = [1, 0, 0], sizes = [1, 4, 1], strides = [1, 1, 1]} : vector<3x4x1xf32> to vector<1x4x1xf32>
    %81 = vector.shape_cast %80 : vector<1x4x1xf32> to vector<4x1xf32>
    %82 = vector.broadcast %81 : vector<4x1xf32> to vector<4x128xf32>
    %83 = arith.mulf %82, %64 : vector<4x128xf32>
    %84 = arith.addf %79, %83 : vector<4x128xf32>
    %85 = vector.extract_strided_slice %65 {offsets = [2, 0, 0], sizes = [1, 4, 1], strides = [1, 1, 1]} : vector<3x4x1xf32> to vector<1x4x1xf32>
    %86 = vector.shape_cast %85 : vector<1x4x1xf32> to vector<4x1xf32>
    %87 = vector.broadcast %86 : vector<4x1xf32> to vector<4x128xf32>
    %88 = arith.mulf %87, %75 : vector<4x128xf32>
    %89 = arith.addf %84, %88 : vector<4x128xf32>
    %c0_31 = arith.constant 0 : index
    %c0_32 = arith.constant 0 : index
    %90 = vector.load %arg8[%c0_31, %c0_32] : memref<4x1xf32, #tpu.memory_space<vmem>>, vector<4x1xf32>
    %91 = vector.broadcast %90 : vector<4x1xf32> to vector<4x128xf32>
    %92 = arith.addf %89, %91 : vector<4x128xf32>
    %cst_33 = arith.constant 0.000000e+00 : f32
    %93 = vector.broadcast %cst_33 : f32 to vector<4x128xf32>
    %94 = arith.maximumf %92, %93 : vector<4x128xf32>
    %c0_34 = arith.constant 0 : index
    %c0_35 = arith.constant 0 : index
    %95 = vector.load %arg9[%c0_34, %c0_35] : memref<4x4xf32, #tpu.memory_space<vmem>>, vector<4x4xf32>
    %96 = vector.extract_strided_slice %95 {offsets = [0, 0], sizes = [4, 1], strides = [1, 1]} : vector<4x4xf32> to vector<4x1xf32>
    %97 = vector.extract_strided_slice %94 {offsets = [0, 0], sizes = [1, 128], strides = [1, 1]} : vector<4x128xf32> to vector<1x128xf32>
    %98 = vector.broadcast %96 : vector<4x1xf32> to vector<4x128xf32>
    %99 = vector.broadcast %97 : vector<1x128xf32> to vector<4x128xf32>
    %100 = arith.mulf %98, %99 : vector<4x128xf32>
    %101 = vector.extract_strided_slice %95 {offsets = [0, 1], sizes = [4, 1], strides = [1, 1]} : vector<4x4xf32> to vector<4x1xf32>
    %102 = vector.extract_strided_slice %94 {offsets = [1, 0], sizes = [1, 128], strides = [1, 1]} : vector<4x128xf32> to vector<1x128xf32>
    %103 = vector.broadcast %101 : vector<4x1xf32> to vector<4x128xf32>
    %104 = vector.broadcast %102 : vector<1x128xf32> to vector<4x128xf32>
    %105 = arith.mulf %103, %104 : vector<4x128xf32>
    %106 = arith.addf %100, %105 : vector<4x128xf32>
    %107 = vector.extract_strided_slice %95 {offsets = [0, 2], sizes = [4, 1], strides = [1, 1]} : vector<4x4xf32> to vector<4x1xf32>
    %108 = vector.extract_strided_slice %94 {offsets = [2, 0], sizes = [1, 128], strides = [1, 1]} : vector<4x128xf32> to vector<1x128xf32>
    %109 = vector.broadcast %107 : vector<4x1xf32> to vector<4x128xf32>
    %110 = vector.broadcast %108 : vector<1x128xf32> to vector<4x128xf32>
    %111 = arith.mulf %109, %110 : vector<4x128xf32>
    %112 = arith.addf %106, %111 : vector<4x128xf32>
    %113 = vector.extract_strided_slice %95 {offsets = [0, 3], sizes = [4, 1], strides = [1, 1]} : vector<4x4xf32> to vector<4x1xf32>
    %114 = vector.extract_strided_slice %94 {offsets = [3, 0], sizes = [1, 128], strides = [1, 1]} : vector<4x128xf32> to vector<1x128xf32>
    %115 = vector.broadcast %113 : vector<4x1xf32> to vector<4x128xf32>
    %116 = vector.broadcast %114 : vector<1x128xf32> to vector<4x128xf32>
    %117 = arith.mulf %115, %116 : vector<4x128xf32>
    %118 = arith.addf %112, %117 : vector<4x128xf32>
    %c0_36 = arith.constant 0 : index
    %c0_37 = arith.constant 0 : index
    %c0_38 = arith.constant 0 : index
    %119 = vector.load %arg2[%c0_36, %c0_37, %c0_38] : memref<1x4x128xf32, #tpu.memory_space<vmem>>, vector<1x4x128xf32>
    %120 = vector.shape_cast %119 : vector<1x4x128xf32> to vector<4x128xf32>
    %121 = arith.addf %120, %118 : vector<4x128xf32>
    %c0_39 = arith.constant 0 : index
    %c0_40 = arith.constant 0 : index
    %c0_41 = arith.constant 0 : index
    %122 = vector.load %arg10[%c0_39, %c0_40, %c0_41] : memref<1x4x128xf32, #tpu.memory_space<vmem>>, vector<1x4x128xf32>
    %123 = vector.shape_cast %122 : vector<1x4x128xf32> to vector<4x128xf32>
    %124 = vector.shape_cast %121 : vector<4x128xf32> to vector<1x4x128xf32>
    tpu.vector_store %arg10[%c0_39, %c0_40, %c0_41], %124 {strides = array<i32>} : memref<1x4x128xf32, #tpu.memory_space<vmem>>, vector<1x4x128xf32>,
    return
  }
  func.func @transform_0(%arg0: i32, %arg1: i32) -> (i32, i32, i32) {
    %c0_i32 = arith.constant 0 : i32
    %c0_i32_0 = arith.constant 0 : i32
    return %arg0, %c0_i32, %arg1 : i32, i32, i32
  }
  func.func @transform_1(%arg0: i32, %arg1: i32) -> (i32, i32, i32, i32) {
    %c0_i32 = arith.constant 0 : i32
    %c0_i32_0 = arith.constant 0 : i32
    %c0_i32_1 = arith.constant 0 : i32
    return %arg0, %arg1, %c0_i32, %c0_i32_0 : i32, i32, i32, i32
  }
  func.func @transform_2(%arg0: i32, %arg1: i32) -> (i32, i32, i32) {
    %c0_i32 = arith.constant 0 : i32
    %c0_i32_0 = arith.constant 0 : i32
    %c0_i32_1 = arith.constant 0 : i32
    %c0_i32_2 = arith.constant 0 : i32
    return %c0_i32, %c0_i32_0, %c0_i32_1 : i32, i32, i32
  }
  func.func @transform_3(%arg0: i32, %arg1: i32) -> (i32, i32) {
    %c0_i32 = arith.constant 0 : i32
    %c0_i32_0 = arith.constant 0 : i32
    %c0_i32_1 = arith.constant 0 : i32
    return %c0_i32, %c0_i32_0 : i32, i32
  }
  func.func @transform_4(%arg0: i32, %arg1: i32) -> (i32, i32) {
    %c0_i32 = arith.constant 0 : i32
    %c0_i32_0 = arith.constant 0 : i32
    %c0_i32_1 = arith.constant 0 : i32
    return %c0_i32, %c0_i32_0 : i32, i32
  }
  func.func @transform_5(%arg0: i32, %arg1: i32) -> (i32, i32, i32) {
    %c0_i32 = arith.constant 0 : i32
    %c0_i32_0 = arith.constant 0 : i32
    %c0_i32_1 = arith.constant 0 : i32
    %c0_i32_2 = arith.constant 0 : i32
    return %c0_i32, %c0_i32_0, %c0_i32_1 : i32, i32, i32
  }
  func.func @transform_6(%arg0: i32, %arg1: i32) -> (i32, i32) {
    %c0_i32 = arith.constant 0 : i32
    %c0_i32_0 = arith.constant 0 : i32
    %c0_i32_1 = arith.constant 0 : i32
    return %c0_i32, %c0_i32_0 : i32, i32
  }
  func.func @transform_7(%arg0: i32, %arg1: i32) -> (i32, i32) {
    %c0_i32 = arith.constant 0 : i32
    %c0_i32_0 = arith.constant 0 : i32
    %c0_i32_1 = arith.constant 0 : i32
    return %c0_i32, %c0_i32_0 : i32, i32
  }
  func.func @transform_8(%arg0: i32, %arg1: i32) -> (i32, i32, i32) {
    %c0_i32 = arith.constant 0 : i32
    %c0_i32_0 = arith.constant 0 : i32
    return %arg0, %c0_i32, %arg1 : i32, i32, i32
  }
}

module attributes {stable_mosaic.version = 11 : i64} {
  func.func @_adsc_kernel(%arg0: i32, %arg1: i32, %arg2: memref<1x4x128xf32, #tpu.memory_space<vmem>>, %arg3: memref<1x1x4x32xf32, #tpu.memory_space<vmem>>, %arg4: memref<3x4x1xf32, #tpu.memory_space<vmem>>, %arg5: memref<4x1xf32, #tpu.memory_space<vmem>>, %arg6: memref<4x4xf32, #tpu.memory_space<vmem>>, %arg7: memref<3x4x1xf32, #tpu.memory_space<vmem>>, %arg8: memref<4x1xf32, #tpu.memory_space<vmem>>, %arg9: memref<4x4xf32, #tpu.memory_space<vmem>>, %arg10: memref<1x4x128xf32, #tpu.memory_space<vmem>>, %arg11: memref<4x128xf32, #tpu.memory_space<vmem>>) attributes {dimension_semantics = [#tpu.dimension_semantics<parallel>, #tpu.dimension_semantics<parallel>], iteration_bounds = array<i64: 2, 2>, scalar_prefetch = 0 : i64, scratch_operands = 1 : i64, tpu.core_type = #tpu.core_type<tc>, window_params = [{transform_indices = @transform_0, window_bounds = array<i64: 1, 4, 128>}, {transform_indices = @transform_1, window_bounds = array<i64: 1, 1, 4, 32>}, {pipeline_mode = #tpu.pipeline_mode<synchronous>, transform_indices = @transform_2, window_bounds = array<i64: 3, 4, 1>}, {pipeline_mode = #tpu.pipeline_mode<synchronous>, transform_indices = @transform_3, window_bounds = array<i64: 4, 1>}, {pipeline_mode = #tpu.pipeline_mode<synchronous>, transform_indices = @transform_4, window_bounds = array<i64: 4, 4>}, {pipeline_mode = #tpu.pipeline_mode<synchronous>, transform_indices = @transform_5, window_bounds = array<i64: 3, 4, 1>}, {pipeline_mode = #tpu.pipeline_mode<synchronous>, transform_indices = @transform_6, window_bounds = array<i64: 4, 1>}, {pipeline_mode = #tpu.pipeline_mode<synchronous>, transform_indices = @transform_7, window_bounds = array<i64: 4, 4>}, {transform_indices = @transform_8, window_bounds = array<i64: 1, 4, 128>}]} {
    %c0 = arith.constant 0 : index
    %c0_0 = arith.constant 0 : index
    %c0_1 = arith.constant 0 : index
    %0 = vector.load %arg2[%c0, %c0_0, %c0_1] : memref<1x4x128xf32, #tpu.memory_space<vmem>>, vector<1x4x128xf32>
    %1 = vector.shape_cast %0 : vector<1x4x128xf32> to vector<4x128xf32>
    %2 = tpu.iota {dimensions = array<i32: 1>} : vector<1x128xi32>
    %c15_i32 = arith.constant 15 : i32
    %3 = vector.broadcast %c15_i32 : i32 to vector<1x128xi32>
    %4 = arith.andi %2, %3 : vector<1x128xi32>
    %c1_i32 = arith.constant 1 : i32
    %5 = vector.broadcast %c1_i32 : i32 to vector<1x128xi32>
    %6 = arith.cmpi sge, %4, %5 : vector<1x128xi32>
    %c15_i32_2 = arith.constant 15 : i32
    %7 = vector.broadcast %c15_i32_2 : i32 to vector<1x128xi32>
    %8 = arith.cmpi slt, %4, %7 : vector<1x128xi32>
    %c0_3 = arith.constant 0 : index
    %c0_4 = arith.constant 0 : index
    %c0_5 = arith.constant 0 : index
    %c0_6 = arith.constant 0 : index
    %9 = vector.load %arg3[%c0_3, %c0_4, %c0_5, %c0_6] : memref<1x1x4x32xf32, #tpu.memory_space<vmem>>, vector<1x1x4x32xf32>
    %10 = vector.shape_cast %9 : vector<1x1x4x32xf32> to vector<4x32xf32>
    %c0_7 = arith.constant 0 : index
    %c0_8 = arith.constant 0 : index
    %c0_9 = arith.constant 0 : index
    %11 = vector.load %arg4[%c0_7, %c0_8, %c0_9] : memref<3x4x1xf32, #tpu.memory_space<vmem>>, vector<3x4x1xf32>
    %c16_i32 = arith.constant 16 : i32
    %12 = tpu.dynamic_rotate %1 by %c16_i32 dim 1 : vector<4x128xf32>, i32 -> vector<4x128xf32>
    %c0_10 = arith.constant 0 : index
    %c0_11 = arith.constant 0 : index
    %13 = vector.load %arg11[%c0_10, %c0_11] : memref<4x128xf32, #tpu.memory_space<vmem>>, vector<4x128xf32>
    tpu.vector_store %arg11[%c0_10, %c0_11], %12 {strides = array<i32>} : memref<4x128xf32, #tpu.memory_space<vmem>>, vector<4x128xf32>,
    %14 = vector.extract_strided_slice %10 {offsets = [0, 0], sizes = [4, 16], strides = [1, 1]} : vector<4x32xf32> to vector<4x16xf32>
    %c0_12 = arith.constant 0 : index
    %c0_13 = arith.constant 0 : index
    %15 = vector.load %arg11[%c0_12, %c0_13] : memref<4x128xf32, #tpu.memory_space<vmem>>, vector<4x16xf32>
    tpu.vector_store %arg11[%c0_12, %c0_13], %14 {strides = array<i32>} : memref<4x128xf32, #tpu.memory_space<vmem>>, vector<4x16xf32>,
    %16 = vector.extract_strided_slice %11 {offsets = [0, 0, 0], sizes = [1, 4, 1], strides = [1, 1, 1]} : vector<3x4x1xf32> to vector<1x4x1xf32>
    %17 = vector.shape_cast %16 : vector<1x4x1xf32> to vector<4x1xf32>
    %c0_14 = arith.constant 0 : index
    %c0_15 = arith.constant 0 : index
    %18 = vector.load %arg11[%c0_14, %c0_15] : memref<4x128xf32, #tpu.memory_space<vmem>>, vector<4x128xf32>
    %19 = vector.broadcast %17 : vector<4x1xf32> to vector<4x128xf32>
    %20 = arith.mulf %19, %18 : vector<4x128xf32>
    %21 = vector.extract_strided_slice %11 {offsets = [1, 0, 0], sizes = [1, 4, 1], strides = [1, 1, 1]} : vector<3x4x1xf32> to vector<1x4x1xf32>
    %22 = vector.shape_cast %21 : vector<1x4x1xf32> to vector<4x1xf32>
    %23 = vector.broadcast %22 : vector<4x1xf32> to vector<4x128xf32>
    %24 = arith.mulf %23, %1 : vector<4x128xf32>
    %25 = arith.addf %20, %24 : vector<4x128xf32>
    %c112_i32 = arith.constant 112 : i32
    %26 = tpu.dynamic_rotate %1 by %c112_i32 dim 1 : vector<4x128xf32>, i32 -> vector<4x128xf32>
    %c0_16 = arith.constant 0 : index
    %c0_17 = arith.constant 0 : index
    %27 = vector.load %arg11[%c0_16, %c0_17] : memref<4x128xf32, #tpu.memory_space<vmem>>, vector<4x128xf32>
    tpu.vector_store %arg11[%c0_16, %c0_17], %26 {strides = array<i32>} : memref<4x128xf32, #tpu.memory_space<vmem>>, vector<4x128xf32>,
    %28 = vector.extract_strided_slice %10 {offsets = [0, 16], sizes = [4, 16], strides = [1, 1]} : vector<4x32xf32> to vector<4x16xf32>
    %c0_18 = arith.constant 0 : index
    %c112 = arith.constant 112 : index
    %29 = vector.load %arg11[%c0_18, %c112] : memref<4x128xf32, #tpu.memory_space<vmem>>, vector<4x16xf32>
    tpu.vector_store %arg11[%c0_18, %c112], %28 {strides = array<i32>} : memref<4x128xf32, #tpu.memory_space<vmem>>, vector<4x16xf32>,
    %30 = vector.extract_strided_slice %11 {offsets = [2, 0, 0], sizes = [1, 4, 1], strides = [1, 1, 1]} : vector<3x4x1xf32> to vector<1x4x1xf32>
    %31 = vector.shape_cast %30 : vector<1x4x1xf32> to vector<4x1xf32>
    %c0_19 = arith.constant 0 : index
    %c0_20 = arith.constant 0 : index
    %32 = vector.load %arg11[%c0_19, %c0_20] : memref<4x128xf32, #tpu.memory_space<vmem>>, vector<4x128xf32>
    %33 = vector.broadcast %31 : vector<4x1xf32> to vector<4x128xf32>
    %34 = arith.mulf %33, %32 : vector<4x128xf32>
    %35 = arith.addf %25, %34 : vector<4x128xf32>
    %c0_21 = arith.constant 0 : index
    %c0_22 = arith.constant 0 : index
    %36 = vector.load %arg5[%c0_21, %c0_22] : memref<4x1xf32, #tpu.memory_space<vmem>>, vector<4x1xf32>
    %37 = vector.broadcast %36 : vector<4x1xf32> to vector<4x128xf32>
    %38 = arith.addf %35, %37 : vector<4x128xf32>
    %cst = arith.constant 0.000000e+00 : f32
    %39 = vector.broadcast %cst : f32 to vector<4x128xf32>
    %40 = arith.maximumf %38, %39 : vector<4x128xf32>
    %c0_23 = arith.constant 0 : index
    %c0_24 = arith.constant 0 : index
    %41 = vector.load %arg6[%c0_23, %c0_24] : memref<4x4xf32, #tpu.memory_space<vmem>>, vector<4x4xf32>
    %42 = vector.extract_strided_slice %41 {offsets = [0, 0], sizes = [4, 1], strides = [1, 1]} : vector<4x4xf32> to vector<4x1xf32>
    %43 = vector.extract_strided_slice %40 {offsets = [0, 0], sizes = [1, 128], strides = [1, 1]} : vector<4x128xf32> to vector<1x128xf32>
    %44 = vector.broadcast %42 : vector<4x1xf32> to vector<4x128xf32>
    %45 = vector.broadcast %43 : vector<1x128xf32> to vector<4x128xf32>
    %46 = arith.mulf %44, %45 : vector<4x128xf32>
    %47 = vector.extract_strided_slice %41 {offsets = [0, 1], sizes = [4, 1], strides = [1, 1]} : vector<4x4xf32> to vector<4x1xf32>
    %48 = vector.extract_strided_slice %40 {offsets = [1, 0], sizes = [1, 128], strides = [1, 1]} : vector<4x128xf32> to vector<1x128xf32>
    %49 = vector.broadcast %47 : vector<4x1xf32> to vector<4x128xf32>
    %50 = vector.broadcast %48 : vector<1x128xf32> to vector<4x128xf32>
    %51 = arith.mulf %49, %50 : vector<4x128xf32>
    %52 = arith.addf %46, %51 : vector<4x128xf32>
    %53 = vector.extract_strided_slice %41 {offsets = [0, 2], sizes = [4, 1], strides = [1, 1]} : vector<4x4xf32> to vector<4x1xf32>
    %54 = vector.extract_strided_slice %40 {offsets = [2, 0], sizes = [1, 128], strides = [1, 1]} : vector<4x128xf32> to vector<1x128xf32>
    %55 = vector.broadcast %53 : vector<4x1xf32> to vector<4x128xf32>
    %56 = vector.broadcast %54 : vector<1x128xf32> to vector<4x128xf32>
    %57 = arith.mulf %55, %56 : vector<4x128xf32>
    %58 = arith.addf %52, %57 : vector<4x128xf32>
    %59 = vector.extract_strided_slice %41 {offsets = [0, 3], sizes = [4, 1], strides = [1, 1]} : vector<4x4xf32> to vector<4x1xf32>
    %60 = vector.extract_strided_slice %40 {offsets = [3, 0], sizes = [1, 128], strides = [1, 1]} : vector<4x128xf32> to vector<1x128xf32>
    %61 = vector.broadcast %59 : vector<4x1xf32> to vector<4x128xf32>
    %62 = vector.broadcast %60 : vector<1x128xf32> to vector<4x128xf32>
    %63 = arith.mulf %61, %62 : vector<4x128xf32>
    %64 = arith.addf %58, %63 : vector<4x128xf32>
    %c0_25 = arith.constant 0 : index
    %c0_26 = arith.constant 0 : index
    %c0_27 = arith.constant 0 : index
    %65 = vector.load %arg7[%c0_25, %c0_26, %c0_27] : memref<3x4x1xf32, #tpu.memory_space<vmem>>, vector<3x4x1xf32>
    %c1_i32_28 = arith.constant 1 : i32
    %66 = tpu.dynamic_rotate %64 by %c1_i32_28 dim 1 : vector<4x128xf32>, i32 -> vector<4x128xf32>
    %cst_29 = arith.constant 0.000000e+00 : f32
    %67 = vector.shape_cast %6 : vector<1x128xi1> to vector<1x128xi1>
    %68 = vector.broadcast %67 : vector<1x128xi1> to vector<4x128xi1>
    %69 = vector.broadcast %cst_29 : f32 to vector<4x128xf32>
    %70 = arith.select %68, %66, %69 : vector<4x128xi1>, vector<4x128xf32>
    %c127_i32 = arith.constant 127 : i32
    %71 = tpu.dynamic_rotate %64 by %c127_i32 dim 1 : vector<4x128xf32>, i32 -> vector<4x128xf32>
    %cst_30 = arith.constant 0.000000e+00 : f32
    %72 = vector.shape_cast %8 : vector<1x128xi1> to vector<1x128xi1>
    %73 = vector.broadcast %72 : vector<1x128xi1> to vector<4x128xi1>
    %74 = vector.broadcast %cst_30 : f32 to vector<4x128xf32>
    %75 = arith.select %73, %71, %74 : vector<4x128xi1>, vector<4x128xf32>
    %76 = vector.extract_strided_slice %65 {offsets = [0, 0, 0], sizes = [1, 4, 1], strides = [1, 1, 1]} : vector<3x4x1xf32> to vector<1x4x1xf32>
    %77 = vector.shape_cast %76 : vector<1x4x1xf32> to vector<4x1xf32>
    %78 = vector.broadcast %77 : vector<4x1xf32> to vector<4x128xf32>
    %79 = arith.mulf %78, %70 : vector<4x128xf32>
    %80 = vector.extract_strided_slice %65 {offsets = [1, 0, 0], sizes = [1, 4, 1], strides = [1, 1, 1]} : vector<3x4x1xf32> to vector<1x4x1xf32>
    %81 = vector.shape_cast %80 : vector<1x4x1xf32> to vector<4x1xf32>
    %82 = vector.broadcast %81 : vector<4x1xf32> to vector<4x128xf32>
    %83 = arith.mulf %82, %64 : vector<4x128xf32>
    %84 = arith.addf %79, %83 : vector<4x128xf32>
    %85 = vector.extract_strided_slice %65 {offsets = [2, 0, 0], sizes = [1, 4, 1], strides = [1, 1, 1]} : vector<3x4x1xf32> to vector<1x4x1xf32>
    %86 = vector.shape_cast %85 : vector<1x4x1xf32> to vector<4x1xf32>
    %87 = vector.broadcast %86 : vector<4x1xf32> to vector<4x128xf32>
    %88 = arith.mulf %87, %75 : vector<4x128xf32>
    %89 = arith.addf %84, %88 : vector<4x128xf32>
    %c0_31 = arith.constant 0 : index
    %c0_32 = arith.constant 0 : index
    %90 = vector.load %arg8[%c0_31, %c0_32] : memref<4x1xf32, #tpu.memory_space<vmem>>, vector<4x1xf32>
    %91 = vector.broadcast %90 : vector<4x1xf32> to vector<4x128xf32>
    %92 = arith.addf %89, %91 : vector<4x128xf32>
    %cst_33 = arith.constant 0.000000e+00 : f32
    %93 = vector.broadcast %cst_33 : f32 to vector<4x128xf32>
    %94 = arith.maximumf %92, %93 : vector<4x128xf32>
    %c0_34 = arith.constant 0 : index
    %c0_35 = arith.constant 0 : index
    %95 = vector.load %arg9[%c0_34, %c0_35] : memref<4x4xf32, #tpu.memory_space<vmem>>, vector<4x4xf32>
    %96 = vector.extract_strided_slice %95 {offsets = [0, 0], sizes = [4, 1], strides = [1, 1]} : vector<4x4xf32> to vector<4x1xf32>
    %97 = vector.extract_strided_slice %94 {offsets = [0, 0], sizes = [1, 128], strides = [1, 1]} : vector<4x128xf32> to vector<1x128xf32>
    %98 = vector.broadcast %96 : vector<4x1xf32> to vector<4x128xf32>
    %99 = vector.broadcast %97 : vector<1x128xf32> to vector<4x128xf32>
    %100 = arith.mulf %98, %99 : vector<4x128xf32>
    %101 = vector.extract_strided_slice %95 {offsets = [0, 1], sizes = [4, 1], strides = [1, 1]} : vector<4x4xf32> to vector<4x1xf32>
    %102 = vector.extract_strided_slice %94 {offsets = [1, 0], sizes = [1, 128], strides = [1, 1]} : vector<4x128xf32> to vector<1x128xf32>
    %103 = vector.broadcast %101 : vector<4x1xf32> to vector<4x128xf32>
    %104 = vector.broadcast %102 : vector<1x128xf32> to vector<4x128xf32>
    %105 = arith.mulf %103, %104 : vector<4x128xf32>
    %106 = arith.addf %100, %105 : vector<4x128xf32>
    %107 = vector.extract_strided_slice %95 {offsets = [0, 2], sizes = [4, 1], strides = [1, 1]} : vector<4x4xf32> to vector<4x1xf32>
    %108 = vector.extract_strided_slice %94 {offsets = [2, 0], sizes = [1, 128], strides = [1, 1]} : vector<4x128xf32> to vector<1x128xf32>
    %109 = vector.broadcast %107 : vector<4x1xf32> to vector<4x128xf32>
    %110 = vector.broadcast %108 : vector<1x128xf32> to vector<4x128xf32>
    %111 = arith.mulf %109, %110 : vector<4x128xf32>
    %112 = arith.addf %106, %111 : vector<4x128xf32>
    %113 = vector.extract_strided_slice %95 {offsets = [0, 3], sizes = [4, 1], strides = [1, 1]} : vector<4x4xf32> to vector<4x1xf32>
    %114 = vector.extract_strided_slice %94 {offsets = [3, 0], sizes = [1, 128], strides = [1, 1]} : vector<4x128xf32> to vector<1x128xf32>
    %115 = vector.broadcast %113 : vector<4x1xf32> to vector<4x128xf32>
    %116 = vector.broadcast %114 : vector<1x128xf32> to vector<4x128xf32>
    %117 = arith.mulf %115, %116 : vector<4x128xf32>
    %118 = arith.addf %112, %117 : vector<4x128xf32>
    %c0_36 = arith.constant 0 : index
    %c0_37 = arith.constant 0 : index
    %c0_38 = arith.constant 0 : index
    %119 = vector.load %arg2[%c0_36, %c0_37, %c0_38] : memref<1x4x128xf32, #tpu.memory_space<vmem>>, vector<1x4x128xf32>
    %120 = vector.shape_cast %119 : vector<1x4x128xf32> to vector<4x128xf32>
    %121 = arith.addf %120, %118 : vector<4x128xf32>
    %c0_39 = arith.constant 0 : index
    %c0_40 = arith.constant 0 : index
    %c0_41 = arith.constant 0 : index
    %122 = vector.load %arg10[%c0_39, %c0_40, %c0_41] : memref<1x4x128xf32, #tpu.memory_space<vmem>>, vector<1x4x128xf32>
    %123 = vector.shape_cast %122 : vector<1x4x128xf32> to vector<4x128xf32>
    %124 = vector.shape_cast %121 : vector<4x128xf32> to vector<1x4x128xf32>
    tpu.vector_store %arg10[%c0_39, %c0_40, %c0_41], %124 {strides = array<i32>} : memref<1x4x128xf32, #tpu.memory_space<vmem>>, vector<1x4x128xf32>,
    return
  }
  func.func @transform_0(%arg0: i32, %arg1: i32) -> (i32, i32, i32) {
    %c0_i32 = arith.constant 0 : i32
    %c0_i32_0 = arith.constant 0 : i32
    return %arg0, %c0_i32, %arg1 : i32, i32, i32
  }
  func.func @transform_1(%arg0: i32, %arg1: i32) -> (i32, i32, i32, i32) {
    %c0_i32 = arith.constant 0 : i32
    %c0_i32_0 = arith.constant 0 : i32
    %c0_i32_1 = arith.constant 0 : i32
    return %arg0, %arg1, %c0_i32, %c0_i32_0 : i32, i32, i32, i32
  }
  func.func @transform_2(%arg0: i32, %arg1: i32) -> (i32, i32, i32) {
    %c0_i32 = arith.constant 0 : i32
    %c0_i32_0 = arith.constant 0 : i32
    %c0_i32_1 = arith.constant 0 : i32
    %c0_i32_2 = arith.constant 0 : i32
    return %c0_i32, %c0_i32_0, %c0_i32_1 : i32, i32, i32
  }
  func.func @transform_3(%arg0: i32, %arg1: i32) -> (i32, i32) {
    %c0_i32 = arith.constant 0 : i32
    %c0_i32_0 = arith.constant 0 : i32
    %c0_i32_1 = arith.constant 0 : i32
    return %c0_i32, %c0_i32_0 : i32, i32
  }
  func.func @transform_4(%arg0: i32, %arg1: i32) -> (i32, i32) {
    %c0_i32 = arith.constant 0 : i32
    %c0_i32_0 = arith.constant 0 : i32
    %c0_i32_1 = arith.constant 0 : i32
    return %c0_i32, %c0_i32_0 : i32, i32
  }
  func.func @transform_5(%arg0: i32, %arg1: i32) -> (i32, i32, i32) {
    %c0_i32 = arith.constant 0 : i32
    %c0_i32_0 = arith.constant 0 : i32
    %c0_i32_1 = arith.constant 0 : i32
    %c0_i32_2 = arith.constant 0 : i32
    return %c0_i32, %c0_i32_0, %c0_i32_1 : i32, i32, i32
  }
  func.func @transform_6(%arg0: i32, %arg1: i32) -> (i32, i32) {
    %c0_i32 = arith.constant 0 : i32
    %c0_i32_0 = arith.constant 0 : i32
    %c0_i32_1 = arith.constant 0 : i32
    return %c0_i32, %c0_i32_0 : i32, i32
  }
  func.func @transform_7(%arg0: i32, %arg1: i32) -> (i32, i32) {
    %c0_i32 = arith.constant 0 : i32
    %c0_i32_0 = arith.constant 0 : i32
    %c0_i32_1 = arith.constant 0 : i32
    return %c0_i32, %c0_i32_0 : i32, i32
  }
  func.func @transform_8(%arg0: i32, %arg1: i32) -> (i32, i32, i32) {
    %c0_i32 = arith.constant 0 : i32
    %c0_i32_0 = arith.constant 0 : i32
    return %arg0, %c0_i32, %arg1 : i32, i32, i32
  }
}

</mosaic_0001>

<llo_original>
// kernel: tpu_custom_call.1
$region0: #{tpu_custom_call.1}
  #allocation0 [shape = 'u32[]', space=smem, size = 0x4, offset = 0x4, fixed_abs, tag = 'smem constant byte address 0x4 - core index']
  #allocation1 [shape = 'u32[144,128]{1,0:T(1,128)}', space=vmem, size = 0x12000, scoped, tag = 'internal scratch']
  #allocation2 [shape = 'f32[4,128]{1,0:T(4,128)}', space=vmem, size = 0x800, scoped, tag = 'scratch operand']
  %s0 = inlined_call_operand.vmem [shape: f32[2,4,256], index: 0, kind: input, shape index: {}]
  %s1 = inlined_call_operand.vmem [shape: f32[2,2,4,32], index: 1, kind: input, shape index: {}]
  %s2 = inlined_call_operand.vmem [shape: f32[3,4,1], index: 2, kind: input, shape index: {}]
  %s3 = inlined_call_operand.vmem [shape: f32[4,1], index: 3, kind: input, shape index: {}]
  %s4 = inlined_call_operand.vmem [shape: f32[4,4], index: 4, kind: input, shape index: {}]
  %s5 = inlined_call_operand.vmem [shape: f32[3,4,1], index: 5, kind: input, shape index: {}]
  %s6 = inlined_call_operand.vmem [shape: f32[4,1], index: 6, kind: input, shape index: {}]
  %s7 = inlined_call_operand.vmem [shape: f32[4,4], index: 7, kind: input, shape index: {}]
  %s8 = inlined_call_operand.hbm [shape: f32[2,4,256], index: 8, kind: output, shape index: {}]
  %s9 = sld [smem:[#allocation0]]
  $region65: #{tpu_custom_call.1} parent=0
    _
  %s11 = ssub.s32 1, %s9
  %s12 = scalar_select 0, %s11, %s9
  $region1: #{tpu_custom_call.1} parent=0
    #allocation3 [shape = 'u8[4096]{0}', space=vmem, size = 0x1000, scoped, tag = 'output window, operand 0']
    #allocation4 [shape = 's32[2]{0}', space=sflag, size = 0x8, scoped, tag = 'scoped memory for tpu_custom_call.1']
    %13 = vsyncpa [#allocation4], 0
    %s14 = scalar_lea.sflag [#allocation4], 1
    %15 = vsyncpa %s14, 0
    loop: start=0, step=1, limit=6
    $region2: #{tpu_custom_call.1} parent=1 // loop_pre_header
      _
    $region3: #{tpu_custom_call.1} parent=1 // loop_header
      %s17 = sphi 0, %s21
      %p18 = scmp.ge.s32.totalorder %s17, 6
      %s24 = sphi 0, %s36
      %s25 = sphi 0, %s32
      %s26 = sphi 0, %s24
      %s27 = sphi 0, %s25
      %s28 = sphi 0, %s26
      %s29 = sphi 0, %s27
      %s41 = sphi 0, %s43
      %s44 = sphi 0, %s41
      %s45 = sphi 0, %s44
      %s61 = sphi 0, %s45
      %s69 = sphi 0, %s71
      %s72 = sphi 0, %s69
      %s73 = sphi 0, %s72
      %s89 = sphi 0, %s73
      %s93 = sphi 0, %s93
      %s95 = sphi 0, %s93
      %s96 = sphi 0, %s95
      %s110 = sphi 0, %s96
      %s114 = sphi 0, %s114
      %s116 = sphi 0, %s114
      %s117 = sphi 0, %s116
      %s131 = sphi 0, %s117
      %s135 = sphi 0, %s135
      %s137 = sphi 0, %s135
      %s138 = sphi 0, %s137
      %s152 = sphi 0, %s138
      %s156 = sphi 0, %s156
      %s158 = sphi 0, %s156
      %s159 = sphi 0, %s158
      %s173 = sphi 0, %s159
      %s177 = sphi 0, %s177
      %s179 = sphi 0, %s177
      %s180 = sphi 0, %s179
      %s194 = sphi 0, %s180
      %s198 = sphi 0, %s198
      %s200 = sphi 0, %s198
      %s201 = sphi 0, %s200
      %s215 = sphi 0, %s201
      %s223 = sphi 0, %s225
      %s226 = sphi 0, %s223
      %s227 = sphi 0, %s226
      %s243 = sphi 0, %s227
    $region4: #{tpu_custom_call.1} parent=1 // loop_header_branch
      %20 = sbr.rel (%p18) target = $region8
    $region5: #{tpu_custom_call.1} parent=1 // loop_body
      %s22 = ssub.s32 %s17, 1
      %s23 = ssub.s32 %s17, 2
      %s30 = sadd.s32 1, %s25
      %p31 = scmp.ge.s32.totalorder %s30, 2
      %s32 = scalar_select %p31, 0, %s30
      %s33 = sadd.s32 1, %s24
      %s34 = scalar_select %p31, %s33, %s24
      %p35 = scmp.ge.s32.totalorder %s34, 2
      %s36 = scalar_select %p35, 0, %s34
      %s37 = ssub.s32 %s24, %s36
      %s38 = ssub.s32 %s25, %s32
      %s39 = sor.u32 %s37, %s38
      %p40 = scmp.eq.s32.totalorder %s39, 0
      %s42 = sadd.s32 %s41, 1
      %s43 = scalar_select %p40, %s41, %s42
      %p46 = pneg %p40
      %p47 = scmp.eq.s32.totalorder %s17, 3
      %p48 = por %p46, %p47
      %p49 = scmp.ne.s32.totalorder %s41, %s44
      %p50 = scmp.eq.s32.totalorder %s17, 0
      %p51 = por %p49, %p50
      %p52 = scmp.ne.s32.totalorder %s41, %s44
      %p53 = scmp.eq.s32.totalorder %s22, 3
      %p54 = por %p52, %p53
      %p55 = scmp.ne.s32.totalorder %s44, %s45
      %p56 = scmp.eq.s32.totalorder %s22, 0
      %p57 = por %p55, %p56
      %p58 = scmp.ne.s32.totalorder %s44, %s45
      %p59 = scmp.eq.s32.totalorder %s23, 3
      %p60 = por %p58, %p59
      %p62 = scmp.ne.s32.totalorder %s45, %s61
      %p63 = scmp.eq.s32.totalorder %s23, 0
      %p64 = por %p62, %p63
      %s65 = ssub.s32 %s24, %s36
      %s66 = ssub.s32 %s25, %s32
      %s67 = sor.u32 %s65, %s66
      %p68 = scmp.eq.s32.totalorder %s67, 0
      %s70 = sadd.s32 %s69, 1
      %s71 = scalar_select %p68, %s69, %s70
      %p74 = pneg %p68
      %p75 = scmp.eq.s32.totalorder %s17, 3
      %p76 = por %p74, %p75
      %p77 = scmp.ne.s32.totalorder %s69, %s72
      %p78 = scmp.eq.s32.totalorder %s17, 0
      %p79 = por %p77, %p78
      %p80 = scmp.ne.s32.totalorder %s69, %s72
      %p81 = scmp.eq.s32.totalorder %s22, 3
      %p82 = por %p80, %p81
      %p83 = scmp.ne.s32.totalorder %s72, %s73
      %p84 = scmp.eq.s32.totalorder %s22, 0
      %p85 = por %p83, %p84
      %p86 = scmp.ne.s32.totalorder %s72, %s73
      %p87 = scmp.eq.s32.totalorder %s23, 3
      %p88 = por %p86, %p87
      %p90 = scmp.ne.s32.totalorder %s73, %s89
      %p91 = scmp.eq.s32.totalorder %s23, 0
      %p92 = por %p90, %p91
      %s94 = sadd.s32 %s93, 1
      %p97 = scmp.eq.s32.totalorder %s17, 3
      %p98 = scmp.ne.s32.totalorder %s93, %s95
      %p99 = scmp.eq.s32.totalorder %s17, 0
      %p100 = por %p98, %p99
      %p101 = scmp.ne.s32.totalorder %s93, %s95
      %p102 = scmp.eq.s32.totalorder %s22, 3
      %p103 = por %p101, %p102
      %p104 = scmp.ne.s32.totalorder %s95, %s96
      %p105 = scmp.eq.s32.totalorder %s22, 0
      %p106 = por %p104, %p105
      %p107 = scmp.ne.s32.totalorder %s95, %s96
      %p108 = scmp.eq.s32.totalorder %s23, 3
      %p109 = por %p107, %p108
      %p111 = scmp.ne.s32.totalorder %s96, %s110
      %p112 = scmp.eq.s32.totalorder %s23, 0
      %p113 = por %p111, %p112
      %s115 = sadd.s32 %s114, 1
      %p118 = scmp.eq.s32.totalorder %s17, 3
      %p119 = scmp.ne.s32.totalorder %s114, %s116
      %p120 = scmp.eq.s32.totalorder %s17, 0
      %p121 = por %p119, %p120
      %p122 = scmp.ne.s32.totalorder %s114, %s116
      %p123 = scmp.eq.s32.totalorder %s22, 3
      %p124 = por %p122, %p123
      %p125 = scmp.ne.s32.totalorder %s116, %s117
      %p126 = scmp.eq.s32.totalorder %s22, 0
      %p127 = por %p125, %p126
      %p128 = scmp.ne.s32.totalorder %s116, %s117
      %p129 = scmp.eq.s32.totalorder %s23, 3
      %p130 = por %p128, %p129
      %p132 = scmp.ne.s32.totalorder %s117, %s131
      %p133 = scmp.eq.s32.totalorder %s23, 0
      %p134 = por %p132, %p133
      %s136 = sadd.s32 %s135, 1
      %p139 = scmp.eq.s32.totalorder %s17, 3
      %p140 = scmp.ne.s32.totalorder %s135, %s137
      %p141 = scmp.eq.s32.totalorder %s17, 0
      %p142 = por %p140, %p141
      %p143 = scmp.ne.s32.totalorder %s135, %s137
      %p144 = scmp.eq.s32.totalorder %s22, 3
      %p145 = por %p143, %p144
      %p146 = scmp.ne.s32.totalorder %s137, %s138
      %p147 = scmp.eq.s32.totalorder %s22, 0
      %p148 = por %p146, %p147
      %p149 = scmp.ne.s32.totalorder %s137, %s138
      %p150 = scmp.eq.s32.totalorder %s23, 3
      %p151 = por %p149, %p150
      %p153 = scmp.ne.s32.totalorder %s138, %s152
      %p154 = scmp.eq.s32.totalorder %s23, 0
      %p155 = por %p153, %p154
      %s157 = sadd.s32 %s156, 1
      %p160 = scmp.eq.s32.totalorder %s17, 3
      %p161 = scmp.ne.s32.totalorder %s156, %s158
      %p162 = scmp.eq.s32.totalorder %s17, 0
      %p163 = por %p161, %p162
      %p164 = scmp.ne.s32.totalorder %s156, %s158
      %p165 = scmp.eq.s32.totalorder %s22, 3
      %p166 = por %p164, %p165
      %p167 = scmp.ne.s32.totalorder %s158, %s159
      %p168 = scmp.eq.s32.totalorder %s22, 0
      %p169 = por %p167, %p168
      %p170 = scmp.ne.s32.totalorder %s158, %s159
      %p171 = scmp.eq.s32.totalorder %s23, 3
      %p172 = por %p170, %p171
      %p174 = scmp.ne.s32.totalorder %s159, %s173
      %p175 = scmp.eq.s32.totalorder %s23, 0
      %p176 = por %p174, %p175
      %s178 = sadd.s32 %s177, 1
      %p181 = scmp.eq.s32.totalorder %s17, 3
      %p182 = scmp.ne.s32.totalorder %s177, %s179
      %p183 = scmp.eq.s32.totalorder %s17, 0
      %p184 = por %p182, %p183
      %p185 = scmp.ne.s32.totalorder %s177, %s179
      %p186 = scmp.eq.s32.totalorder %s22, 3
      %p187 = por %p185, %p186
      %p188 = scmp.ne.s32.totalorder %s179, %s180
      %p189 = scmp.eq.s32.totalorder %s22, 0
      %p190 = por %p188, %p189
      %p191 = scmp.ne.s32.totalorder %s179, %s180
      %p192 = scmp.eq.s32.totalorder %s23, 3
      %p193 = por %p191, %p192
      %p195 = scmp.ne.s32.totalorder %s180, %s194
      %p196 = scmp.eq.s32.totalorder %s23, 0
      %p197 = por %p195, %p196
      %s199 = sadd.s32 %s198, 1
      %p202 = scmp.eq.s32.totalorder %s17, 3
      %p203 = scmp.ne.s32.totalorder %s198, %s200
      %p204 = scmp.eq.s32.totalorder %s17, 0
      %p205 = por %p203, %p204
      %p206 = scmp.ne.s32.totalorder %s198, %s200
      %p207 = scmp.eq.s32.totalorder %s22, 3
      %p208 = por %p206, %p207
      %p209 = scmp.ne.s32.totalorder %s200, %s201
      %p210 = scmp.eq.s32.totalorder %s22, 0
      %p211 = por %p209, %p210
      %p212 = scmp.ne.s32.totalorder %s200, %s201
      %p213 = scmp.eq.s32.totalorder %s23, 3
      %p214 = por %p212, %p213
      %p216 = scmp.ne.s32.totalorder %s201, %s215
      %p217 = scmp.eq.s32.totalorder %s23, 0
      %p218 = por %p216, %p217
      %s219 = ssub.s32 %s24, %s36
      %s220 = ssub.s32 %s25, %s32
      %s221 = sor.u32 %s219, %s220
      %p222 = scmp.eq.s32.totalorder %s221, 0
      %s224 = sadd.s32 %s223, 1
      %s225 = scalar_select %p222, %s223, %s224
      %p228 = pneg %p222
      %p229 = scmp.eq.s32.totalorder %s17, 3
      %p230 = por %p228, %p229
      %p231 = scmp.ne.s32.totalorder %s223, %s226
      %p232 = scmp.eq.s32.totalorder %s17, 0
      %p233 = por %p231, %p232
      %p234 = scmp.ne.s32.totalorder %s223, %s226
      %p235 = scmp.eq.s32.totalorder %s22, 3
      %p236 = por %p234, %p235
      %p237 = scmp.ne.s32.totalorder %s226, %s227
      %p238 = scmp.eq.s32.totalorder %s22, 0
      %p239 = por %p237, %p238
      %p240 = scmp.ne.s32.totalorder %s226, %s227
      %p241 = scmp.eq.s32.totalorder %s23, 3
      %p242 = por %p240, %p241
      %p244 = scmp.ne.s32.totalorder %s227, %s243
      %p245 = scmp.eq.s32.totalorder %s23, 0
      %p246 = por %p244, %p245
      %p247 = scmp.le.s32.totalorder 1, %s17
      %p248 = scmp.lt.s32.totalorder %s17, 5
      %p249 = pnand %p247, %p248
      %p250 = pneg %p249
      // Predicated region
      $region9: #{tpu_custom_call.1} parent=5 // pred_check
        _
      $region10: #{tpu_custom_call.1} parent=5 // pred_check_branch
        %252 = sbr.rel (%p249) target = $region12
      $region11: #{tpu_custom_call.1} parent=5 // pred_region
        %s253 = ssub.s32 %s17, 1
        // Predicated region
        $region13: #{tpu_custom_call.1} parent=11 // pred_check
          %p254 = pneg %p106
        $region14: #{tpu_custom_call.1} parent=11 // pred_check_branch
          %256 = sbr.rel (%p254) target = $region16
        $region15: #{tpu_custom_call.1} parent=11 // pred_region
          _
        $region16: #{tpu_custom_call.1} parent=11 // pred_fallthru
          _
        // Predicated region
        $region17: #{tpu_custom_call.1} parent=11 // pred_check
          %p257 = pneg %p127
        $region18: #{tpu_custom_call.1} parent=11 // pred_check_branch
          %259 = sbr.rel (%p257) target = $region20
        $region19: #{tpu_custom_call.1} parent=11 // pred_region
          _
        $region20: #{tpu_custom_call.1} parent=11 // pred_fallthru
          _
        // Predicated region
        $region21: #{tpu_custom_call.1} parent=11 // pred_check
          %p260 = pneg %p148
        $region22: #{tpu_custom_call.1} parent=11 // pred_check_branch
          %262 = sbr.rel (%p260) target = $region24
        $region23: #{tpu_custom_call.1} parent=11 // pred_region
          _
        $region24: #{tpu_custom_call.1} parent=11 // pred_fallthru
          _
        // Predicated region
        $region25: #{tpu_custom_call.1} parent=11 // pred_check
          %p263 = pneg %p169
        $region26: #{tpu_custom_call.1} parent=11 // pred_check_branch
          %265 = sbr.rel (%p263) target = $region28
        $region27: #{tpu_custom_call.1} parent=11 // pred_region
          _
        $region28: #{tpu_custom_call.1} parent=11 // pred_fallthru
          _
        // Predicated region
        $region29: #{tpu_custom_call.1} parent=11 // pred_check
          %p266 = pneg %p190
        $region30: #{tpu_custom_call.1} parent=11 // pred_check_branch
          %268 = sbr.rel (%p266) target = $region32
        $region31: #{tpu_custom_call.1} parent=11 // pred_region
          _
        $region32: #{tpu_custom_call.1} parent=11 // pred_fallthru
          _
        // Predicated region
        $region33: #{tpu_custom_call.1} parent=11 // pred_check
          %p269 = pneg %p211
        $region34: #{tpu_custom_call.1} parent=11 // pred_check_branch
          %271 = sbr.rel (%p269) target = $region36
        $region35: #{tpu_custom_call.1} parent=11 // pred_region
          _
        $region36: #{tpu_custom_call.1} parent=11 // pred_fallthru
          _
      $region12: #{tpu_custom_call.1} parent=5 // pred_fallthru
        _
      %p272 = scmp.lt.s32.totalorder %s17, 4
      // Predicated region
      $region37: #{tpu_custom_call.1} parent=5 // pred_check
        %p273 = pneg %p272
      $region38: #{tpu_custom_call.1} parent=5 // pred_check_branch
        %275 = sbr.rel (%p273) target = $region40
      $region39: #{tpu_custom_call.1} parent=5 // pred_region
        // Predicated region
        $region41: #{tpu_custom_call.1} parent=39 // pred_check
          %p276 = pneg %p51
        $region42: #{tpu_custom_call.1} parent=39 // pred_check_branch
          %278 = sbr.rel (%p276) target = $region44
        $region43: #{tpu_custom_call.1} parent=39 // pred_region
          %p279 = scmp.lt.s32.totalorder %s24, 1
          %s280 = scalar_select %p279, %s24, 1
          %p281 = scmp.lt.s32.totalorder %s25, 1
          %s282 = scalar_select %p281, %s25, 1
          %s283 = smul.addr %s280, 2
          %s284 = sadd.s32 %s282, %s283
          %s285 = smul.addr %s284, 4
          %s286 = scalar_lea.vmem %s0, %s285
        $region44: #{tpu_custom_call.1} parent=39 // pred_fallthru
          _
        // Predicated region
        $region45: #{tpu_custom_call.1} parent=39 // pred_check
          %p287 = pneg %p79
        $region46: #{tpu_custom_call.1} parent=39 // pred_check_branch
          %289 = sbr.rel (%p287) target = $region48
        $region47: #{tpu_custom_call.1} parent=39 // pred_region
          %p290 = scmp.lt.s32.totalorder %s24, 1
          %s291 = scalar_select %p290, %s24, 1
          %p292 = scmp.lt.s32.totalorder %s25, 1
          %s293 = scalar_select %p292, %s25, 1
          %s294 = smul.addr %s291, 2
          %s295 = sadd.s32 %s293, %s294
          %s296 = smul.addr %s295, 4
          %s297 = scalar_lea.vmem %s1, %s296
        $region48: #{tpu_custom_call.1} parent=39 // pred_fallthru
          _
      $region40: #{tpu_custom_call.1} parent=5 // pred_fallthru
        _
      %p298 = scmp.le.s32.totalorder 1, %s17
      %p299 = scmp.lt.s32.totalorder %s17, 5
      %p300 = pnand %p298, %p299
      %p301 = pneg %p300
      // Predicated region
      $region49: #{tpu_custom_call.1} parent=5 // pred_check
        _
      $region50: #{tpu_custom_call.1} parent=5 // pred_check_branch
        %303 = sbr.rel (%p300) target = $region52
      $region51: #{tpu_custom_call.1} parent=5 // pred_region
        %s304 = ssub.s32 %s17, 1
        %p305 = scmp.lt.s32.totalorder %s26, 1
        %s306 = scalar_select %p305, %s26, 1
        %p307 = scmp.lt.s32.totalorder %s27, 1
        %s308 = scalar_select %p307, %s27, 1
        %s309 = smul.addr %s306, 2
        %s310 = sadd.s32 %s308, %s309
        %s311 = smul.addr %s310, 4
        %s312 = scalar_lea.vmem %s0, %s311
        %p313 = pneg %p57
        %p314 = pneg %p54
        %p315 = scmp.lt.s32.totalorder %s26, 1
        %s316 = scalar_select %p315, %s26, 1
        %p317 = scmp.lt.s32.totalorder %s27, 1
        %s318 = scalar_select %p317, %s27, 1
        %s319 = smul.addr %s316, 2
        %s320 = sadd.s32 %s318, %s319
        %s321 = smul.addr %s320, 4
        %s322 = scalar_lea.vmem %s1, %s321
        %p323 = pneg %p85
        %p324 = pneg %p82
        %p325 = pneg %p106
        %p326 = pneg %p103
        %p327 = pneg %p127
        %p328 = pneg %p124
        %p329 = pneg %p148
        %p330 = pneg %p145
        %p331 = pneg %p169
        %p332 = pneg %p166
        %p333 = pneg %p190
        %p334 = pneg %p187
        %p335 = pneg %p211
        %p336 = pneg %p208
        %p337 = pneg %p239
        %p338 = pneg %p236
        %s339 = sand.u32 %s226, 1
        %s340 = scalar_lea.sflag [#allocation4], %s339
        %s341 = sand.u32 %s226, 1
        %s342 = smul.addr %s341, 4
        %s343 = scalar_lea.vmem [#allocation3], %s342
        %p344 = scmp.lt.s32.totalorder %s26, 1
        %s345 = scalar_select %p344, %s26, 1
        %p346 = scmp.lt.s32.totalorder %s27, 1
        %s347 = scalar_select %p346, %s27, 1
        %s348 = smul.addr %s345, 2
        %s349 = sadd.s32 %s347, %s348
        %s350 = smul.addr %s349, 4
        %s351 = scalar_lea.vmem %s0, %s350
        %p352 = scmp.lt.s32.totalorder %s26, 1
        %s353 = scalar_select %p352, %s26, 1
        %p354 = scmp.lt.s32.totalorder %s27, 1
        %s355 = scalar_select %p354, %s27, 1
        %s356 = smul.addr %s353, 2
        %s357 = sadd.s32 %s355, %s356
        %s358 = smul.addr %s357, 4
        %s359 = scalar_lea.vmem %s1, %s358
        %v360 = vld [vmem:[%s351] sm:$0xf]
        %v361 = vlaneseq
        %v362 = vand.u32 %v361, 127
        %v363 = vand.u32 %v362, 15
        %vm364 = vcmp.ge.s32.totalorder %v363, 1
        %vm365 = vcmp.lt.s32.totalorder %v363, 15
        %v366 = vld [vmem:[%s359] sm:$0xf]
        %v367 = vld [vmem:[%s2] sm:$0xf]
        %v368 = vld [vmem:[%s2 + $0x4] sm:$0xf]
        %v369 = vld [vmem:[%s2 + $0x8] sm:$0xf]
        %370 = vrot.lane.b32.xlu0 %v360, 16
        %v371 = vpop.permute.xlu0 %370
        %372 = vst [vmem:[#allocation2] sm:$0xf] %v371
        %vm373 = vcmask 125952
        %374 = vst.msk [vmem:[#allocation2] sm:$0xf] %vm373, %v366
        %v375 = vld [vmem:[#allocation2] sm:$0xf]
        %377 = vset.pattern.permute.xlu0 0
        %378 = vperm.xlu0 %377, %v367
        %v379 = vpop.permute.xlu0 %378
        %v381 = vmul.f32 %v379, %v375
        %383 = vset.pattern.permute.xlu0 0
        %384 = vperm.xlu0 %383, %v368
        %v385 = vpop.permute.xlu0 %384
        %v387 = vmul.f32 %v385, %v360
        %v388 = vadd.f32 %v381, %v387
        %389 = vrot.lane.b32.xlu0 %v360, 112
        %v390 = vpop.permute.xlu0 %389
        %391 = vst [vmem:[#allocation2] sm:$0xf] %v390
        %393 = vrot.lane.b32.xlu0 %v366, 96
        %v394 = vpop.permute.xlu0 %393
        %vm396 = vcmask 1044352
        %397 = vst.msk [vmem:[#allocation2] sm:$0xf] %vm396, %v394
        %v398 = vld [vmem:[#allocation2] sm:$0xf]
        %400 = vset.pattern.permute.xlu0 0
        %401 = vperm.xlu0 %400, %v369
        %v402 = vpop.permute.xlu0 %401
        %v404 = vmul.f32 %v402, %v398
        %v405 = vadd.f32 %v388, %v404
        %v406 = vld [vmem:[%s3] sm:$0xf]
        %408 = vset.pattern.permute.xlu0 0
        %409 = vperm.xlu0 %408, %v406
        %v410 = vpop.permute.xlu0 %409
        %v412 = vadd.f32 %v405, %v410
        %v413 = vmax.f32 %v412, 0.0
        %v414 = vld [vmem:[%s4] sm:$0xf]
        %416 = vset.pattern.permute.xlu0 0
        %417 = vperm.xlu0 %416, %v414
        %v418 = vpop.permute.xlu0 %417
        %v420 = vlaneseq
        %v421 = vshrl.u32 %v420, 7
        %v422 = vsub.s32 0, %v421
        %v423 = vrot.slane %v413, %v422
        %v424 = vmul.f32 %v418, %v423
        %425 = vset.pattern.permute.xlu0 1
        %426 = vperm.xlu0 %425, %v414
        %v427 = vpop.permute.xlu0 %426
        %v429 = vlaneseq
        %v430 = vshrl.u32 %v429, 7
        %v431 = vsub.s32 1, %v430
        %v432 = vrot.slane %v413, %v431
        %v433 = vmul.f32 %v427, %v432
        %v434 = vadd.f32 %v424, %v433
        %435 = vset.pattern.permute.xlu0 2
        %436 = vperm.xlu0 %435, %v414
        %v437 = vpop.permute.xlu0 %436
        %v439 = vlaneseq
        %v440 = vshrl.u32 %v439, 7
        %v441 = vsub.s32 2, %v440
        %v442 = vrot.slane %v413, %v441
        %v443 = vmul.f32 %v437, %v442
        %v444 = vadd.f32 %v434, %v443
        %445 = vset.pattern.permute.xlu0 3
        %446 = vperm.xlu0 %445, %v414
        %v447 = vpop.permute.xlu0 %446
        %v449 = vlaneseq
        %v450 = vshrl.u32 %v449, 7
        %v451 = vsub.s32 3, %v450
        %v452 = vrot.slane %v413, %v451
        %v453 = vmul.f32 %v447, %v452
        %v454 = vadd.f32 %v444, %v453
        %v455 = vld [vmem:[%s5] sm:$0xf]
        %v456 = vld [vmem:[%s5 + $0x4] sm:$0xf]
        %v457 = vld [vmem:[%s5 + $0x8] sm:$0xf]
        %458 = vrot.lane.b32.xlu0 %v454, 1
        %v459 = vpop.permute.xlu0 %458
        %v460 = vsel %vm364, 1, 0
        %vm461 = vcmp.eq.s32.totalorder %v460, 1
        %v462 = vsel %vm461, %v459, 0.0
        %463 = vrot.lane.b32.xlu0 %v454, 127
        %v464 = vpop.permute.xlu0 %463
        %v465 = vsel %vm365, 1, 0
        %vm466 = vcmp.eq.s32.totalorder %v465, 1
        %v467 = vsel %vm466, %v464, 0.0
        %469 = vset.pattern.permute.xlu0 0
        %470 = vperm.xlu0 %469, %v455
        %v471 = vpop.permute.xlu0 %470
        %v473 = vmul.f32 %v471, %v462
        %475 = vset.pattern.permute.xlu0 0
        %476 = vperm.xlu0 %475, %v456
        %v477 = vpop.permute.xlu0 %476
        %v479 = vmul.f32 %v477, %v454
        %v480 = vadd.f32 %v473, %v479
        %482 = vset.pattern.permute.xlu0 0
        %483 = vperm.xlu0 %482, %v457
        %v484 = vpop.permute.xlu0 %483
        %v486 = vmul.f32 %v484, %v467
        %v487 = vadd.f32 %v480, %v486
        %v488 = vld [vmem:[%s6] sm:$0xf]
        %490 = vset.pattern.permute.xlu0 0
        %491 = vperm.xlu0 %490, %v488
        %v492 = vpop.permute.xlu0 %491
        %v494 = vadd.f32 %v487, %v492
        %v495 = vmax.f32 %v494, 0.0
        %v496 = vld [vmem:[%s7] sm:$0xf]
        %498 = vset.pattern.permute.xlu0 0
        %499 = vperm.xlu0 %498, %v496
        %v500 = vpop.permute.xlu0 %499
        %v502 = vlaneseq
        %v503 = vshrl.u32 %v502, 7
        %v504 = vsub.s32 0, %v503
        %v505 = vrot.slane %v495, %v504
        %v506 = vmul.f32 %v500, %v505
        %507 = vset.pattern.permute.xlu0 1
        %508 = vperm.xlu0 %507, %v496
        %v509 = vpop.permute.xlu0 %508
        %v511 = vlaneseq
        %v512 = vshrl.u32 %v511, 7
        %v513 = vsub.s32 1, %v512
        %v514 = vrot.slane %v495, %v513
        %v515 = vmul.f32 %v509, %v514
        %v516 = vadd.f32 %v506, %v515
        %517 = vset.pattern.permute.xlu0 2
        %518 = vperm.xlu0 %517, %v496
        %v519 = vpop.permute.xlu0 %518
        %v521 = vlaneseq
        %v522 = vshrl.u32 %v521, 7
        %v523 = vsub.s32 2, %v522
        %v524 = vrot.slane %v495, %v523
        %v525 = vmul.f32 %v519, %v524
        %v526 = vadd.f32 %v516, %v525
        %527 = vset.pattern.permute.xlu0 3
        %528 = vperm.xlu0 %527, %v496
        %v529 = vpop.permute.xlu0 %528
        %v531 = vlaneseq
        %v532 = vshrl.u32 %v531, 7
        %v533 = vsub.s32 3, %v532
        %v534 = vrot.slane %v495, %v533
        %v535 = vmul.f32 %v529, %v534
        %v536 = vadd.f32 %v526, %v535
        %v537 = vld [vmem:[%s351] sm:$0xf]
        %v538 = vadd.f32 %v537, %v536
        %539 = vst [vmem:[%s343] sm:$0xf] %v538
        %s540 = sand.u32 %s226, 1
        %s541 = scalar_lea.sflag [#allocation4], %s540
        %s542 = sand.u32 %s226, 1
        %s543 = smul.addr %s542, 4
        %s544 = scalar_lea.vmem [#allocation3], %s543
        // Predicated region
        $region53: #{tpu_custom_call.1} parent=51 // pred_check
          %p545 = pneg %p236
        $region54: #{tpu_custom_call.1} parent=51 // pred_check_branch
          %547 = sbr.rel (%p545) target = $region56
        $region55: #{tpu_custom_call.1} parent=51 // pred_region
          %s549 = ssub.s32 64, 64
          %550 = vsyncadd %s541, %s549
          %s551 = smul.addr %s26, 2
          %s552 = sadd.s32 %s27, %s551
          %s553 = smul.addr %s552, 64
          %s554 = scalar_lea.hbm %s8, %s553
          %s556 = sshll.u32 %s544, 4
          %s557 = int_to_ptr.vmem [resolvable:$true] %s556
          %559 = dma.vmem_to_hbm [thread:$0]  %s557, 64, %s554, %s541
        $region56: #{tpu_custom_call.1} parent=51 // pred_fallthru
          _
      $region52: #{tpu_custom_call.1} parent=5 // pred_fallthru
        _
      %p560 = scmp.le.s32.totalorder 2, %s17
      // Predicated region
      $region57: #{tpu_custom_call.1} parent=5 // pred_check
        %p561 = pneg %p560
      $region58: #{tpu_custom_call.1} parent=5 // pred_check_branch
        %563 = sbr.rel (%p561) target = $region60
      $region59: #{tpu_custom_call.1} parent=5 // pred_region
        %s564 = ssub.s32 %s17, 2
        // Predicated region
        $region61: #{tpu_custom_call.1} parent=59 // pred_check
          %p565 = pneg %p242
        $region62: #{tpu_custom_call.1} parent=59 // pred_check_branch
          %567 = sbr.rel (%p565) target = $region64
        $region63: #{tpu_custom_call.1} parent=59 // pred_region
          %s568 = sand.u32 %s227, 1
          %s569 = scalar_lea.sflag [#allocation4], %s568
          %s570 = sand.u32 %s227, 1
          %s571 = smul.addr %s570, 4
          %s572 = scalar_lea.vmem [#allocation3], %s571
          %573 = dma.done %s569, 64
        $region64: #{tpu_custom_call.1} parent=59 // pred_fallthru
          _
      $region60: #{tpu_custom_call.1} parent=5 // pred_fallthru
        _
    $region6: #{tpu_custom_call.1} parent=1 // loop_footer
      %s21 = sadd.s32 1, %s17
    $region7: #{tpu_custom_call.1} parent=1 // loop_footer_branch
      %16 = sbr.rel target = $region3
    $region8: #{tpu_custom_call.1} parent=1 // loop_exit
      _
    %574 = vsyncpa [#allocation4], 1
    %s575 = scalar_lea.sflag [#allocation4], 1
    %576 = vsyncpa %s575, 1

// kernel: tpu_custom_call.1
$region0: #{tpu_custom_call.1}
  #allocation0 [shape = 'u32[]', space=smem, size = 0x4, offset = 0x4, fixed_abs, tag = 'smem constant byte address 0x4 - core index']
  #allocation1 [shape = 'u32[144,128]{1,0:T(1,128)}', space=vmem, size = 0x12000, scoped, tag = 'internal scratch']
  #allocation2 [shape = 'f32[4,128]{1,0:T(4,128)}', space=vmem, size = 0x800, scoped, tag = 'scratch operand']
  %s0 = inlined_call_operand.vmem [shape: f32[2,4,256], index: 0, kind: input, shape index: {}]
  %s1 = inlined_call_operand.vmem [shape: f32[2,2,4,32], index: 1, kind: input, shape index: {}]
  %s2 = inlined_call_operand.vmem [shape: f32[3,4,1], index: 2, kind: input, shape index: {}]
  %s3 = inlined_call_operand.vmem [shape: f32[4,1], index: 3, kind: input, shape index: {}]
  %s4 = inlined_call_operand.vmem [shape: f32[4,4], index: 4, kind: input, shape index: {}]
  %s5 = inlined_call_operand.vmem [shape: f32[3,4,1], index: 5, kind: input, shape index: {}]
  %s6 = inlined_call_operand.vmem [shape: f32[4,1], index: 6, kind: input, shape index: {}]
  %s7 = inlined_call_operand.vmem [shape: f32[4,4], index: 7, kind: input, shape index: {}]
  %s8 = inlined_call_operand.hbm [shape: f32[2,4,256], index: 8, kind: output, shape index: {}]
  %s9 = sld [smem:[#allocation0]]
  $region65: #{tpu_custom_call.1} parent=0
    _
  %s11 = ssub.s32 1, %s9
  %s12 = scalar_select 0, %s11, %s9
  $region1: #{tpu_custom_call.1} parent=0
    #allocation3 [shape = 'u8[4096]{0}', space=vmem, size = 0x1000, scoped, tag = 'output window, operand 0']
    #allocation4 [shape = 's32[2]{0}', space=sflag, size = 0x8, scoped, tag = 'scoped memory for tpu_custom_call.1']
    %13 = vsyncpa [#allocation4], 0
    %s14 = scalar_lea.sflag [#allocation4], 1
    %15 = vsyncpa %s14, 0
    loop: start=0, step=1, limit=6
    $region2: #{tpu_custom_call.1} parent=1 // loop_pre_header
      _
    $region3: #{tpu_custom_call.1} parent=1 // loop_header
      %s17 = sphi 0, %s21
      %p18 = scmp.ge.s32.totalorder %s17, 6
      %s24 = sphi 0, %s36
      %s25 = sphi 0, %s32
      %s26 = sphi 0, %s24
      %s27 = sphi 0, %s25
      %s28 = sphi 0, %s26
      %s29 = sphi 0, %s27
      %s41 = sphi 0, %s43
      %s44 = sphi 0, %s41
      %s45 = sphi 0, %s44
      %s61 = sphi 0, %s45
      %s69 = sphi 0, %s71
      %s72 = sphi 0, %s69
      %s73 = sphi 0, %s72
      %s89 = sphi 0, %s73
      %s93 = sphi 0, %s93
      %s95 = sphi 0, %s93
      %s96 = sphi 0, %s95
      %s110 = sphi 0, %s96
      %s114 = sphi 0, %s114
      %s116 = sphi 0, %s114
      %s117 = sphi 0, %s116
      %s131 = sphi 0, %s117
      %s135 = sphi 0, %s135
      %s137 = sphi 0, %s135
      %s138 = sphi 0, %s137
      %s152 = sphi 0, %s138
      %s156 = sphi 0, %s156
      %s158 = sphi 0, %s156
      %s159 = sphi 0, %s158
      %s173 = sphi 0, %s159
      %s177 = sphi 0, %s177
      %s179 = sphi 0, %s177
      %s180 = sphi 0, %s179
      %s194 = sphi 0, %s180
      %s198 = sphi 0, %s198
      %s200 = sphi 0, %s198
      %s201 = sphi 0, %s200
      %s215 = sphi 0, %s201
      %s223 = sphi 0, %s225
      %s226 = sphi 0, %s223
      %s227 = sphi 0, %s226
      %s243 = sphi 0, %s227
    $region4: #{tpu_custom_call.1} parent=1 // loop_header_branch
      %20 = sbr.rel (%p18) target = $region8
    $region5: #{tpu_custom_call.1} parent=1 // loop_body
      %s22 = ssub.s32 %s17, 1
      %s23 = ssub.s32 %s17, 2
      %s30 = sadd.s32 1, %s25
      %p31 = scmp.ge.s32.totalorder %s30, 2
      %s32 = scalar_select %p31, 0, %s30
      %s33 = sadd.s32 1, %s24
      %s34 = scalar_select %p31, %s33, %s24
      %p35 = scmp.ge.s32.totalorder %s34, 2
      %s36 = scalar_select %p35, 0, %s34
      %s37 = ssub.s32 %s24, %s36
      %s38 = ssub.s32 %s25, %s32
      %s39 = sor.u32 %s37, %s38
      %p40 = scmp.eq.s32.totalorder %s39, 0
      %s42 = sadd.s32 %s41, 1
      %s43 = scalar_select %p40, %s41, %s42
      %p46 = pneg %p40
      %p47 = scmp.eq.s32.totalorder %s17, 3
      %p48 = por %p46, %p47
      %p49 = scmp.ne.s32.totalorder %s41, %s44
      %p50 = scmp.eq.s32.totalorder %s17, 0
      %p51 = por %p49, %p50
      %p52 = scmp.ne.s32.totalorder %s41, %s44
      %p53 = scmp.eq.s32.totalorder %s22, 3
      %p54 = por %p52, %p53
      %p55 = scmp.ne.s32.totalorder %s44, %s45
      %p56 = scmp.eq.s32.totalorder %s22, 0
      %p57 = por %p55, %p56
      %p58 = scmp.ne.s32.totalorder %s44, %s45
      %p59 = scmp.eq.s32.totalorder %s23, 3
      %p60 = por %p58, %p59
      %p62 = scmp.ne.s32.totalorder %s45, %s61
      %p63 = scmp.eq.s32.totalorder %s23, 0
      %p64 = por %p62, %p63
      %s65 = ssub.s32 %s24, %s36
      %s66 = ssub.s32 %s25, %s32
      %s67 = sor.u32 %s65, %s66
      %p68 = scmp.eq.s32.totalorder %s67, 0
      %s70 = sadd.s32 %s69, 1
      %s71 = scalar_select %p68, %s69, %s70
      %p74 = pneg %p68
      %p75 = scmp.eq.s32.totalorder %s17, 3
      %p76 = por %p74, %p75
      %p77 = scmp.ne.s32.totalorder %s69, %s72
      %p78 = scmp.eq.s32.totalorder %s17, 0
      %p79 = por %p77, %p78
      %p80 = scmp.ne.s32.totalorder %s69, %s72
      %p81 = scmp.eq.s32.totalorder %s22, 3
      %p82 = por %p80, %p81
      %p83 = scmp.ne.s32.totalorder %s72, %s73
      %p84 = scmp.eq.s32.totalorder %s22, 0
      %p85 = por %p83, %p84
      %p86 = scmp.ne.s32.totalorder %s72, %s73
      %p87 = scmp.eq.s32.totalorder %s23, 3
      %p88 = por %p86, %p87
      %p90 = scmp.ne.s32.totalorder %s73, %s89
      %p91 = scmp.eq.s32.totalorder %s23, 0
      %p92 = por %p90, %p91
      %s94 = sadd.s32 %s93, 1
      %p97 = scmp.eq.s32.totalorder %s17, 3
      %p98 = scmp.ne.s32.totalorder %s93, %s95
      %p99 = scmp.eq.s32.totalorder %s17, 0
      %p100 = por %p98, %p99
      %p101 = scmp.ne.s32.totalorder %s93, %s95
      %p102 = scmp.eq.s32.totalorder %s22, 3
      %p103 = por %p101, %p102
      %p104 = scmp.ne.s32.totalorder %s95, %s96
      %p105 = scmp.eq.s32.totalorder %s22, 0
      %p106 = por %p104, %p105
      %p107 = scmp.ne.s32.totalorder %s95, %s96
      %p108 = scmp.eq.s32.totalorder %s23, 3
      %p109 = por %p107, %p108
      %p111 = scmp.ne.s32.totalorder %s96, %s110
      %p112 = scmp.eq.s32.totalorder %s23, 0
      %p113 = por %p111, %p112
      %s115 = sadd.s32 %s114, 1
      %p118 = scmp.eq.s32.totalorder %s17, 3
      %p119 = scmp.ne.s32.totalorder %s114, %s116
      %p120 = scmp.eq.s32.totalorder %s17, 0
      %p121 = por %p119, %p120
      %p122 = scmp.ne.s32.totalorder %s114, %s116
      %p123 = scmp.eq.s32.totalorder %s22, 3
      %p124 = por %p122, %p123
      %p125 = scmp.ne.s32.totalorder %s116, %s117
      %p126 = scmp.eq.s32.totalorder %s22, 0
      %p127 = por %p125, %p126
      %p128 = scmp.ne.s32.totalorder %s116, %s117
      %p129 = scmp.eq.s32.totalorder %s23, 3
      %p130 = por %p128, %p129
      %p132 = scmp.ne.s32.totalorder %s117, %s131
      %p133 = scmp.eq.s32.totalorder %s23, 0
      %p134 = por %p132, %p133
      %s136 = sadd.s32 %s135, 1
      %p139 = scmp.eq.s32.totalorder %s17, 3
      %p140 = scmp.ne.s32.totalorder %s135, %s137
      %p141 = scmp.eq.s32.totalorder %s17, 0
      %p142 = por %p140, %p141
      %p143 = scmp.ne.s32.totalorder %s135, %s137
      %p144 = scmp.eq.s32.totalorder %s22, 3
      %p145 = por %p143, %p144
      %p146 = scmp.ne.s32.totalorder %s137, %s138
      %p147 = scmp.eq.s32.totalorder %s22, 0
      %p148 = por %p146, %p147
      %p149 = scmp.ne.s32.totalorder %s137, %s138
      %p150 = scmp.eq.s32.totalorder %s23, 3
      %p151 = por %p149, %p150
      %p153 = scmp.ne.s32.totalorder %s138, %s152
      %p154 = scmp.eq.s32.totalorder %s23, 0
      %p155 = por %p153, %p154
      %s157 = sadd.s32 %s156, 1
      %p160 = scmp.eq.s32.totalorder %s17, 3
      %p161 = scmp.ne.s32.totalorder %s156, %s158
      %p162 = scmp.eq.s32.totalorder %s17, 0
      %p163 = por %p161, %p162
      %p164 = scmp.ne.s32.totalorder %s156, %s158
      %p165 = scmp.eq.s32.totalorder %s22, 3
      %p166 = por %p164, %p165
      %p167 = scmp.ne.s32.totalorder %s158, %s159
      %p168 = scmp.eq.s32.totalorder %s22, 0
      %p169 = por %p167, %p168
      %p170 = scmp.ne.s32.totalorder %s158, %s159
      %p171 = scmp.eq.s32.totalorder %s23, 3
      %p172 = por %p170, %p171
      %p174 = scmp.ne.s32.totalorder %s159, %s173
      %p175 = scmp.eq.s32.totalorder %s23, 0
      %p176 = por %p174, %p175
      %s178 = sadd.s32 %s177, 1
      %p181 = scmp.eq.s32.totalorder %s17, 3
      %p182 = scmp.ne.s32.totalorder %s177, %s179
      %p183 = scmp.eq.s32.totalorder %s17, 0
      %p184 = por %p182, %p183
      %p185 = scmp.ne.s32.totalorder %s177, %s179
      %p186 = scmp.eq.s32.totalorder %s22, 3
      %p187 = por %p185, %p186
      %p188 = scmp.ne.s32.totalorder %s179, %s180
      %p189 = scmp.eq.s32.totalorder %s22, 0
      %p190 = por %p188, %p189
      %p191 = scmp.ne.s32.totalorder %s179, %s180
      %p192 = scmp.eq.s32.totalorder %s23, 3
      %p193 = por %p191, %p192
      %p195 = scmp.ne.s32.totalorder %s180, %s194
      %p196 = scmp.eq.s32.totalorder %s23, 0
      %p197 = por %p195, %p196
      %s199 = sadd.s32 %s198, 1
      %p202 = scmp.eq.s32.totalorder %s17, 3
      %p203 = scmp.ne.s32.totalorder %s198, %s200
      %p204 = scmp.eq.s32.totalorder %s17, 0
      %p205 = por %p203, %p204
      %p206 = scmp.ne.s32.totalorder %s198, %s200
      %p207 = scmp.eq.s32.totalorder %s22, 3
      %p208 = por %p206, %p207
      %p209 = scmp.ne.s32.totalorder %s200, %s201
      %p210 = scmp.eq.s32.totalorder %s22, 0
      %p211 = por %p209, %p210
      %p212 = scmp.ne.s32.totalorder %s200, %s201
      %p213 = scmp.eq.s32.totalorder %s23, 3
      %p214 = por %p212, %p213
      %p216 = scmp.ne.s32.totalorder %s201, %s215
      %p217 = scmp.eq.s32.totalorder %s23, 0
      %p218 = por %p216, %p217
      %s219 = ssub.s32 %s24, %s36
      %s220 = ssub.s32 %s25, %s32
      %s221 = sor.u32 %s219, %s220
      %p222 = scmp.eq.s32.totalorder %s221, 0
      %s224 = sadd.s32 %s223, 1
      %s225 = scalar_select %p222, %s223, %s224
      %p228 = pneg %p222
      %p229 = scmp.eq.s32.totalorder %s17, 3
      %p230 = por %p228, %p229
      %p231 = scmp.ne.s32.totalorder %s223, %s226
      %p232 = scmp.eq.s32.totalorder %s17, 0
      %p233 = por %p231, %p232
      %p234 = scmp.ne.s32.totalorder %s223, %s226
      %p235 = scmp.eq.s32.totalorder %s22, 3
      %p236 = por %p234, %p235
      %p237 = scmp.ne.s32.totalorder %s226, %s227
      %p238 = scmp.eq.s32.totalorder %s22, 0
      %p239 = por %p237, %p238
      %p240 = scmp.ne.s32.totalorder %s226, %s227
      %p241 = scmp.eq.s32.totalorder %s23, 3
      %p242 = por %p240, %p241
      %p244 = scmp.ne.s32.totalorder %s227, %s243
      %p245 = scmp.eq.s32.totalorder %s23, 0
      %p246 = por %p244, %p245
      %p247 = scmp.le.s32.totalorder 1, %s17
      %p248 = scmp.lt.s32.totalorder %s17, 5
      %p249 = pnand %p247, %p248
      %p250 = pneg %p249
      // Predicated region
      $region9: #{tpu_custom_call.1} parent=5 // pred_check
        _
      $region10: #{tpu_custom_call.1} parent=5 // pred_check_branch
        %252 = sbr.rel (%p249) target = $region12
      $region11: #{tpu_custom_call.1} parent=5 // pred_region
        %s253 = ssub.s32 %s17, 1
        // Predicated region
        $region13: #{tpu_custom_call.1} parent=11 // pred_check
          %p254 = pneg %p106
        $region14: #{tpu_custom_call.1} parent=11 // pred_check_branch
          %256 = sbr.rel (%p254) target = $region16
        $region15: #{tpu_custom_call.1} parent=11 // pred_region
          _
        $region16: #{tpu_custom_call.1} parent=11 // pred_fallthru
          _
        // Predicated region
        $region17: #{tpu_custom_call.1} parent=11 // pred_check
          %p257 = pneg %p127
        $region18: #{tpu_custom_call.1} parent=11 // pred_check_branch
          %259 = sbr.rel (%p257) target = $region20
        $region19: #{tpu_custom_call.1} parent=11 // pred_region
          _
        $region20: #{tpu_custom_call.1} parent=11 // pred_fallthru
          _
        // Predicated region
        $region21: #{tpu_custom_call.1} parent=11 // pred_check
          %p260 = pneg %p148
        $region22: #{tpu_custom_call.1} parent=11 // pred_check_branch
          %262 = sbr.rel (%p260) target = $region24
        $region23: #{tpu_custom_call.1} parent=11 // pred_region
          _
        $region24: #{tpu_custom_call.1} parent=11 // pred_fallthru
          _
        // Predicated region
        $region25: #{tpu_custom_call.1} parent=11 // pred_check
          %p263 = pneg %p169
        $region26: #{tpu_custom_call.1} parent=11 // pred_check_branch
          %265 = sbr.rel (%p263) target = $region28
        $region27: #{tpu_custom_call.1} parent=11 // pred_region
          _
        $region28: #{tpu_custom_call.1} parent=11 // pred_fallthru
          _
        // Predicated region
        $region29: #{tpu_custom_call.1} parent=11 // pred_check
          %p266 = pneg %p190
        $region30: #{tpu_custom_call.1} parent=11 // pred_check_branch
          %268 = sbr.rel (%p266) target = $region32
        $region31: #{tpu_custom_call.1} parent=11 // pred_region
          _
        $region32: #{tpu_custom_call.1} parent=11 // pred_fallthru
          _
        // Predicated region
        $region33: #{tpu_custom_call.1} parent=11 // pred_check
          %p269 = pneg %p211
        $region34: #{tpu_custom_call.1} parent=11 // pred_check_branch
          %271 = sbr.rel (%p269) target = $region36
        $region35: #{tpu_custom_call.1} parent=11 // pred_region
          _
        $region36: #{tpu_custom_call.1} parent=11 // pred_fallthru
          _
      $region12: #{tpu_custom_call.1} parent=5 // pred_fallthru
        _
      %p272 = scmp.lt.s32.totalorder %s17, 4
      // Predicated region
      $region37: #{tpu_custom_call.1} parent=5 // pred_check
        %p273 = pneg %p272
      $region38: #{tpu_custom_call.1} parent=5 // pred_check_branch
        %275 = sbr.rel (%p273) target = $region40
      $region39: #{tpu_custom_call.1} parent=5 // pred_region
        // Predicated region
        $region41: #{tpu_custom_call.1} parent=39 // pred_check
          %p276 = pneg %p51
        $region42: #{tpu_custom_call.1} parent=39 // pred_check_branch
          %278 = sbr.rel (%p276) target = $region44
        $region43: #{tpu_custom_call.1} parent=39 // pred_region
          %p279 = scmp.lt.s32.totalorder %s24, 1
          %s280 = scalar_select %p279, %s24, 1
          %p281 = scmp.lt.s32.totalorder %s25, 1
          %s282 = scalar_select %p281, %s25, 1
          %s283 = smul.addr %s280, 2
          %s284 = sadd.s32 %s282, %s283
          %s285 = smul.addr %s284, 4
          %s286 = scalar_lea.vmem %s0, %s285
        $region44: #{tpu_custom_call.1} parent=39 // pred_fallthru
          _
        // Predicated region
        $region45: #{tpu_custom_call.1} parent=39 // pred_check
          %p287 = pneg %p79
        $region46: #{tpu_custom_call.1} parent=39 // pred_check_branch
          %289 = sbr.rel (%p287) target = $region48
        $region47: #{tpu_custom_call.1} parent=39 // pred_region
          %p290 = scmp.lt.s32.totalorder %s24, 1
          %s291 = scalar_select %p290, %s24, 1
          %p292 = scmp.lt.s32.totalorder %s25, 1
          %s293 = scalar_select %p292, %s25, 1
          %s294 = smul.addr %s291, 2
          %s295 = sadd.s32 %s293, %s294
          %s296 = smul.addr %s295, 4
          %s297 = scalar_lea.vmem %s1, %s296
        $region48: #{tpu_custom_call.1} parent=39 // pred_fallthru
          _
      $region40: #{tpu_custom_call.1} parent=5 // pred_fallthru
        _
      %p298 = scmp.le.s32.totalorder 1, %s17
      %p299 = scmp.lt.s32.totalorder %s17, 5
      %p300 = pnand %p298, %p299
      %p301 = pneg %p300
      // Predicated region
      $region49: #{tpu_custom_call.1} parent=5 // pred_check
        _
      $region50: #{tpu_custom_call.1} parent=5 // pred_check_branch
        %303 = sbr.rel (%p300) target = $region52
      $region51: #{tpu_custom_call.1} parent=5 // pred_region
        %s304 = ssub.s32 %s17, 1
        %p305 = scmp.lt.s32.totalorder %s26, 1
        %s306 = scalar_select %p305, %s26, 1
        %p307 = scmp.lt.s32.totalorder %s27, 1
        %s308 = scalar_select %p307, %s27, 1
        %s309 = smul.addr %s306, 2
        %s310 = sadd.s32 %s308, %s309
        %s311 = smul.addr %s310, 4
        %s312 = scalar_lea.vmem %s0, %s311
        %p313 = pneg %p57
        %p314 = pneg %p54
        %p315 = scmp.lt.s32.totalorder %s26, 1
        %s316 = scalar_select %p315, %s26, 1
        %p317 = scmp.lt.s32.totalorder %s27, 1
        %s318 = scalar_select %p317, %s27, 1
        %s319 = smul.addr %s316, 2
        %s320 = sadd.s32 %s318, %s319
        %s321 = smul.addr %s320, 4
        %s322 = scalar_lea.vmem %s1, %s321
        %p323 = pneg %p85
        %p324 = pneg %p82
        %p325 = pneg %p106
        %p326 = pneg %p103
        %p327 = pneg %p127
        %p328 = pneg %p124
        %p329 = pneg %p148
        %p330 = pneg %p145
        %p331 = pneg %p169
        %p332 = pneg %p166
        %p333 = pneg %p190
        %p334 = pneg %p187
        %p335 = pneg %p211
        %p336 = pneg %p208
        %p337 = pneg %p239
        %p338 = pneg %p236
        %s339 = sand.u32 %s226, 1
        %s340 = scalar_lea.sflag [#allocation4], %s339
        %s341 = sand.u32 %s226, 1
        %s342 = smul.addr %s341, 4
        %s343 = scalar_lea.vmem [#allocation3], %s342
        %p344 = scmp.lt.s32.totalorder %s26, 1
        %s345 = scalar_select %p344, %s26, 1
        %p346 = scmp.lt.s32.totalorder %s27, 1
        %s347 = scalar_select %p346, %s27, 1
        %s348 = smul.addr %s345, 2
        %s349 = sadd.s32 %s347, %s348
        %s350 = smul.addr %s349, 4
        %s351 = scalar_lea.vmem %s0, %s350
        %p352 = scmp.lt.s32.totalorder %s26, 1
        %s353 = scalar_select %p352, %s26, 1
        %p354 = scmp.lt.s32.totalorder %s27, 1
        %s355 = scalar_select %p354, %s27, 1
        %s356 = smul.addr %s353, 2
        %s357 = sadd.s32 %s355, %s356
        %s358 = smul.addr %s357, 4
        %s359 = scalar_lea.vmem %s1, %s358
        %v360 = vld [vmem:[%s351] sm:$0xf]
        %v361 = vlaneseq
        %v362 = vand.u32 %v361, 127
        %v363 = vand.u32 %v362, 15
        %vm364 = vcmp.ge.s32.totalorder %v363, 1
        %vm365 = vcmp.lt.s32.totalorder %v363, 15
        %v366 = vld [vmem:[%s359] sm:$0xf]
        %v367 = vld [vmem:[%s2] sm:$0xf]
        %v368 = vld [vmem:[%s2 + $0x4] sm:$0xf]
        %v369 = vld [vmem:[%s2 + $0x8] sm:$0xf]
        %370 = vrot.lane.b32.xlu0 %v360, 16
        %v371 = vpop.permute.xlu0 %370
        %372 = vst [vmem:[#allocation2] sm:$0xf] %v371
        %vm373 = vcmask 125952
        %374 = vst.msk [vmem:[#allocation2] sm:$0xf] %vm373, %v366
        %v375 = vld [vmem:[#allocation2] sm:$0xf]
        %377 = vset.pattern.permute.xlu0 0
        %378 = vperm.xlu0 %377, %v367
        %v379 = vpop.permute.xlu0 %378
        %v381 = vmul.f32 %v379, %v375
        %383 = vset.pattern.permute.xlu0 0
        %384 = vperm.xlu0 %383, %v368
        %v385 = vpop.permute.xlu0 %384
        %v387 = vmul.f32 %v385, %v360
        %v388 = vadd.f32 %v381, %v387
        %389 = vrot.lane.b32.xlu0 %v360, 112
        %v390 = vpop.permute.xlu0 %389
        %391 = vst [vmem:[#allocation2] sm:$0xf] %v390
        %393 = vrot.lane.b32.xlu0 %v366, 96
        %v394 = vpop.permute.xlu0 %393
        %vm396 = vcmask 1044352
        %397 = vst.msk [vmem:[#allocation2] sm:$0xf] %vm396, %v394
        %v398 = vld [vmem:[#allocation2] sm:$0xf]
        %400 = vset.pattern.permute.xlu0 0
        %401 = vperm.xlu0 %400, %v369
        %v402 = vpop.permute.xlu0 %401
        %v404 = vmul.f32 %v402, %v398
        %v405 = vadd.f32 %v388, %v404
        %v406 = vld [vmem:[%s3] sm:$0xf]
        %408 = vset.pattern.permute.xlu0 0
        %409 = vperm.xlu0 %408, %v406
        %v410 = vpop.permute.xlu0 %409
        %v412 = vadd.f32 %v405, %v410
        %v413 = vmax.f32 %v412, 0.0
        %v414 = vld [vmem:[%s4] sm:$0xf]
        %416 = vset.pattern.permute.xlu0 0
        %417 = vperm.xlu0 %416, %v414
        %v418 = vpop.permute.xlu0 %417
        %v420 = vlaneseq
        %v421 = vshrl.u32 %v420, 7
        %v422 = vsub.s32 0, %v421
        %v423 = vrot.slane %v413, %v422
        %v424 = vmul.f32 %v418, %v423
        %425 = vset.pattern.permute.xlu0 1
        %426 = vperm.xlu0 %425, %v414
        %v427 = vpop.permute.xlu0 %426
        %v429 = vlaneseq
        %v430 = vshrl.u32 %v429, 7
        %v431 = vsub.s32 1, %v430
        %v432 = vrot.slane %v413, %v431
        %v433 = vmul.f32 %v427, %v432
        %v434 = vadd.f32 %v424, %v433
        %435 = vset.pattern.permute.xlu0 2
        %436 = vperm.xlu0 %435, %v414
        %v437 = vpop.permute.xlu0 %436
        %v439 = vlaneseq
        %v440 = vshrl.u32 %v439, 7
        %v441 = vsub.s32 2, %v440
        %v442 = vrot.slane %v413, %v441
        %v443 = vmul.f32 %v437, %v442
        %v444 = vadd.f32 %v434, %v443
        %445 = vset.pattern.permute.xlu0 3
        %446 = vperm.xlu0 %445, %v414
        %v447 = vpop.permute.xlu0 %446
        %v449 = vlaneseq
        %v450 = vshrl.u32 %v449, 7
        %v451 = vsub.s32 3, %v450
        %v452 = vrot.slane %v413, %v451
        %v453 = vmul.f32 %v447, %v452
        %v454 = vadd.f32 %v444, %v453
        %v455 = vld [vmem:[%s5] sm:$0xf]
        %v456 = vld [vmem:[%s5 + $0x4] sm:$0xf]
        %v457 = vld [vmem:[%s5 + $0x8] sm:$0xf]
        %458 = vrot.lane.b32.xlu0 %v454, 1
        %v459 = vpop.permute.xlu0 %458
        %v460 = vsel %vm364, 1, 0
        %vm461 = vcmp.eq.s32.totalorder %v460, 1
        %v462 = vsel %vm461, %v459, 0.0
        %463 = vrot.lane.b32.xlu0 %v454, 127
        %v464 = vpop.permute.xlu0 %463
        %v465 = vsel %vm365, 1, 0
        %vm466 = vcmp.eq.s32.totalorder %v465, 1
        %v467 = vsel %vm466, %v464, 0.0
        %469 = vset.pattern.permute.xlu0 0
        %470 = vperm.xlu0 %469, %v455
        %v471 = vpop.permute.xlu0 %470
        %v473 = vmul.f32 %v471, %v462
        %475 = vset.pattern.permute.xlu0 0
        %476 = vperm.xlu0 %475, %v456
        %v477 = vpop.permute.xlu0 %476
        %v479 = vmul.f32 %v477, %v454
        %v480 = vadd.f32 %v473, %v479
        %482 = vset.pattern.permute.xlu0 0
        %483 = vperm.xlu0 %482, %v457
        %v484 = vpop.permute.xlu0 %483
        %v486 = vmul.f32 %v484, %v467
        %v487 = vadd.f32 %v480, %v486
        %v488 = vld [vmem:[%s6] sm:$0xf]
        %490 = vset.pattern.permute.xlu0 0
        %491 = vperm.xlu0 %490, %v488
        %v492 = vpop.permute.xlu0 %491
        %v494 = vadd.f32 %v487, %v492
        %v495 = vmax.f32 %v494, 0.0
        %v496 = vld [vmem:[%s7] sm:$0xf]
        %498 = vset.pattern.permute.xlu0 0
        %499 = vperm.xlu0 %498, %v496
        %v500 = vpop.permute.xlu0 %499
        %v502 = vlaneseq
        %v503 = vshrl.u32 %v502, 7
        %v504 = vsub.s32 0, %v503
        %v505 = vrot.slane %v495, %v504
        %v506 = vmul.f32 %v500, %v505
        %507 = vset.pattern.permute.xlu0 1
        %508 = vperm.xlu0 %507, %v496
        %v509 = vpop.permute.xlu0 %508
        %v511 = vlaneseq
        %v512 = vshrl.u32 %v511, 7
        %v513 = vsub.s32 1, %v512
        %v514 = vrot.slane %v495, %v513
        %v515 = vmul.f32 %v509, %v514
        %v516 = vadd.f32 %v506, %v515
        %517 = vset.pattern.permute.xlu0 2
        %518 = vperm.xlu0 %517, %v496
        %v519 = vpop.permute.xlu0 %518
        %v521 = vlaneseq
        %v522 = vshrl.u32 %v521, 7
        %v523 = vsub.s32 2, %v522
        %v524 = vrot.slane %v495, %v523
        %v525 = vmul.f32 %v519, %v524
        %v526 = vadd.f32 %v516, %v525
        %527 = vset.pattern.permute.xlu0 3
        %528 = vperm.xlu0 %527, %v496
        %v529 = vpop.permute.xlu0 %528
        %v531 = vlaneseq
        %v532 = vshrl.u32 %v531, 7
        %v533 = vsub.s32 3, %v532
        %v534 = vrot.slane %v495, %v533
        %v535 = vmul.f32 %v529, %v534
        %v536 = vadd.f32 %v526, %v535
        %v537 = vld [vmem:[%s351] sm:$0xf]
        %v538 = vadd.f32 %v537, %v536
        %539 = vst [vmem:[%s343] sm:$0xf] %v538
        %s540 = sand.u32 %s226, 1
        %s541 = scalar_lea.sflag [#allocation4], %s540
        %s542 = sand.u32 %s226, 1
        %s543 = smul.addr %s542, 4
        %s544 = scalar_lea.vmem [#allocation3], %s543
        // Predicated region
        $region53: #{tpu_custom_call.1} parent=51 // pred_check
          %p545 = pneg %p236
        $region54: #{tpu_custom_call.1} parent=51 // pred_check_branch
          %547 = sbr.rel (%p545) target = $region56
        $region55: #{tpu_custom_call.1} parent=51 // pred_region
          %s549 = ssub.s32 64, 64
          %550 = vsyncadd %s541, %s549
          %s551 = smul.addr %s26, 2
          %s552 = sadd.s32 %s27, %s551
          %s553 = smul.addr %s552, 64
          %s554 = scalar_lea.hbm %s8, %s553
          %s556 = sshll.u32 %s544, 4
          %s557 = int_to_ptr.vmem [resolvable:$true] %s556
          %559 = dma.vmem_to_hbm [thread:$0]  %s557, 64, %s554, %s541
        $region56: #{tpu_custom_call.1} parent=51 // pred_fallthru
          _
      $region52: #{tpu_custom_call.1} parent=5 // pred_fallthru
        _
      %p560 = scmp.le.s32.totalorder 2, %s17
      // Predicated region
      $region57: #{tpu_custom_call.1} parent=5 // pred_check
        %p561 = pneg %p560
      $region58: #{tpu_custom_call.1} parent=5 // pred_check_branch
        %563 = sbr.rel (%p561) target = $region60
      $region59: #{tpu_custom_call.1} parent=5 // pred_region
        %s564 = ssub.s32 %s17, 2
        // Predicated region
        $region61: #{tpu_custom_call.1} parent=59 // pred_check
          %p565 = pneg %p242
        $region62: #{tpu_custom_call.1} parent=59 // pred_check_branch
          %567 = sbr.rel (%p565) target = $region64
        $region63: #{tpu_custom_call.1} parent=59 // pred_region
          %s568 = sand.u32 %s227, 1
          %s569 = scalar_lea.sflag [#allocation4], %s568
          %s570 = sand.u32 %s227, 1
          %s571 = smul.addr %s570, 4
          %s572 = scalar_lea.vmem [#allocation3], %s571
          %573 = dma.done %s569, 64
        $region64: #{tpu_custom_call.1} parent=59 // pred_fallthru
          _
      $region60: #{tpu_custom_call.1} parent=5 // pred_fallthru
        _
    $region6: #{tpu_custom_call.1} parent=1 // loop_footer
      %s21 = sadd.s32 1, %s17
    $region7: #{tpu_custom_call.1} parent=1 // loop_footer_branch
      %16 = sbr.rel target = $region3
    $region8: #{tpu_custom_call.1} parent=1 // loop_exit
      _
    %574 = vsyncpa [#allocation4], 1
    %s575 = scalar_lea.sflag [#allocation4], 1
    %576 = vsyncpa %s575, 1

</llo_original>
